<compile_context>
chip_gen: v7x
topology: tpu7x:2x2x1
jax: 0.10.0
libtpu: 0.0.40
codegen_flags: <defaults>
</compile_context>

<pallas_src>
import functools

import jax
import jax.numpy as jnp
import numpy as np
from jax.experimental import pallas as pl
from jax.experimental.pallas import tpu as pltpu

HI = jax.lax.Precision.HIGHEST
NEG_INF = -1e30


def _gat_layer(h, adj_bias, w_aug, w_elT, b_flat, H, D, res_mode, rw=None):
    """One GATConv layer in lane-dense layout (traced inside the fused kernel).

    h:        (N, F)   input features
    adj_bias: (N, N)   additive mask, 0 on edges j->i, -1e30 elsewhere
    w_aug:    (F, H*D + H)  [per-head fc weights flattened head-major | fc @ attn_r]
    w_elT:    (H, F)   folded source-score weights (fc @ attn_l, pre-transposed)
    b_flat:   (1, H*D) bias
    returns   (N, H*D) == DGL output .flatten(-2)
    """
    HD = H * D
    # Single lane-dense MXU matmul: projections z and destination scores er together.
    z_aug = jnp.dot(h, w_aug, preferred_element_type=jnp.float32)     # (N, HD + H)
    z_flat = z_aug[:, :HD]                                            # (N, H*D)
    er = z_aug[:, HD:HD + H]                                          # (N, H) dst scores
    # Source scores, produced directly as (H, N) via an A @ B^T contraction
    # (standard trans_b matmul) so they broadcast along lanes without a transpose.
    elT = jax.lax.dot_general(w_elT, h, (((1,), (1,)), ((), ())),
                              preferred_element_type=jnp.float32)     # (H, N)

    outs = []
    for hd in range(H):                                               # static unroll, H <= 4
        # e[i, j] = logit of edge j -> i for this head
        e = er[:, hd:hd + 1] + elT[hd:hd + 1, :]                      # (N, N)
        e = jnp.where(e > 0, e, 0.2 * e)                              # LeakyReLU(0.2)
        e = e + adj_bias                                              # additive edge mask
        m = jnp.max(e, axis=-1, keepdims=True)
        p = jnp.exp(e - m)                                            # masked terms -> 0
        alpha = p / jnp.sum(p, axis=-1, keepdims=True)                # edge softmax
        outs.append(jnp.dot(alpha, z_flat[:, hd * D:(hd + 1) * D],
                            preferred_element_type=jnp.float32))      # (N, D)
    rst = jnp.concatenate(outs, axis=-1) if H > 1 else outs[0]        # (N, H*D)

    if res_mode == "identity":          # DGL Identity residual (in == heads*out)
        rst = rst + h
    elif res_mode == "proj":            # learned res_fc projection
        rst = rst + jnp.dot(h, rw, preferred_element_type=jnp.float32)
    # res_mode == "none": layer 0, residual disabled

    rst = rst + b_flat
    return jnp.where(rst > 0, rst, jnp.exp(rst) - 1.0)                # ELU


def _fused_gat_kernel(heads, hid,
                      adj_ref, x_ref,
                      w0_ref, e0_ref, b0_ref,
                      w1_ref, e1_ref, b1_ref,
                      w2_ref, e2_ref, rw2_ref, b2_ref,
                      out_ref):
    """Whole 3-layer GAT forward, VMEM-resident."""
    adj_bias = adj_ref[...]
    h = x_ref[...]
    h = _gat_layer(h, adj_bias, w0_ref[...], e0_ref[...], b0_ref[...],
                   heads[0], hid, "none")
    h = _gat_layer(h, adj_bias, w1_ref[...], e1_ref[...], b1_ref[...],
                   heads[1], hid, "identity")
    h = _gat_layer(h, adj_bias, w2_ref[...], e2_ref[...], b2_ref[...],
                   heads[2], hid, "proj", rw2_ref[...])
    # Final layer: mean over heads -> (N, hid)
    H2 = heads[2]
    acc = h[:, :hid]
    for hd in range(1, H2):
        acc = acc + h[:, hd * hid:(hd + 1) * hid]
    out_ref[...] = (acc * (1.0 / H2)).astype(out_ref.dtype)


def _fold_layer_weights(w, al, ar, b):
    """Pre-fuse per-head GATConv params into lane-dense matrices (wrapper side)."""
    H, F, D = w.shape
    w_flat = jnp.transpose(w, (1, 0, 2)).reshape(F, H * D)            # col h*D+d = w[h,:,d]
    w_er = jnp.einsum('hfd,hd->fh', w, ar[:, 0, :], precision=HI)     # (F, H): er = x @ w_er
    w_aug = jnp.concatenate([w_flat, w_er], axis=-1)                  # (F, H*D + H)
    w_elT = jnp.einsum('hfd,hd->hf', w, al[:, 0, :], precision=HI)    # (H, F): el^T = w_elT @ x^T
    b_flat = b.reshape(1, H * D)
    return w_aug, w_elT, b_flat


def gat_forward_pallas(x, adj, params, hid_size):
    """GAT.forward: 3 GATConv layers, layers 0/1 flatten heads, layer 2 means heads."""
    assert len(params) == 3
    N = x.shape[0]
    heads = tuple(int(p[0].shape[0]) for p in params)
    # Residual structure implied by the module: layer 0 residual=False, layer 1
    # Identity residual (in_feats == heads*out_feats), layer 2 learned res_fc.
    assert params[0][3] is None and params[1][3] is None and params[2][3] is not None

    adj_bias = jnp.where(adj > 0, 0.0, NEG_INF).astype(jnp.float32)   # additive mask

    w0, e0, b0 = _fold_layer_weights(params[0][0], params[0][1], params[0][2], params[0][4])
    w1, e1, b1 = _fold_layer_weights(params[1][0], params[1][1], params[1][2], params[1][4])
    w2, e2, b2 = _fold_layer_weights(params[2][0], params[2][1], params[2][2], params[2][4])
    rw2 = params[2][3]                                                # (H, F, D)
    H2, F2, D2 = rw2.shape
    rw2_flat = jnp.transpose(rw2, (1, 0, 2)).reshape(F2, H2 * D2)     # (F, H*D)

    inputs = (adj_bias, x, w0, e0, b0, w1, e1, b1, w2, e2, rw2_flat, b2)

    kernel = functools.partial(_fused_gat_kernel, heads, hid_size)

    def full_spec(a):
        return pl.BlockSpec(a.shape, lambda i: (0, 0))                # all inputs are 2-D

    return pl.pallas_call(
        kernel,
        out_shape=jax.ShapeDtypeStruct((N, hid_size), jnp.float32),
        grid=(1,),
        in_specs=[full_spec(a) for a in inputs],
        out_specs=pl.BlockSpec((N, hid_size), lambda i: (0, 0)),
        compiler_params=pltpu.CompilerParams(dimension_semantics=("arbitrary",)),
    )(*inputs)


# ----------------------------- pure-JAX reference ----------------------------- #
def gat_conv_ref(x, adj, w, al, ar, rw, b, layer_idx):
    H, F, D = w.shape
    N = x.shape[0]
    z = jnp.einsum('nf,hfd->hnd', x, w, precision=HI)                 # (H, N, D)
    el = jnp.sum(z * al, axis=-1)                                     # (H, N) source
    er = jnp.sum(z * ar, axis=-1)                                     # (H, N) dest
    e = er[:, :, None] + el[:, None, :]                               # (H, N, N)
    e = jnp.where(e > 0, e, 0.2 * e)
    mask = adj[None, :, :] > 0.0
    e = jnp.where(mask, e, NEG_INF)
    p = jnp.where(mask, jnp.exp(e - jnp.max(e, axis=-1, keepdims=True)), 0.0)
    alpha = p / jnp.sum(p, axis=-1, keepdims=True)
    rst = jnp.einsum('hij,hjd->hid', alpha, z, precision=HI)
    if layer_idx > 0:
        if rw is None:                                                # Identity residual
            rst = rst + jnp.transpose(x.reshape(N, H, D), (1, 0, 2))
        else:                                                         # res_fc projection
            rst = rst + jnp.einsum('nf,hfd->hnd', x, rw, precision=HI)
    rst = rst + b
    return jnp.where(rst > 0, rst, jnp.exp(rst) - 1.0)                # ELU


def gat_forward_ref(x, adj, params):
    h = x
    for i, (w, al, ar, rw, b) in enumerate(params):
        out = gat_conv_ref(h, adj, w, al, ar, rw, b, i)               # (H, N, D)
        H, N, D = out.shape
        if i == 2:
            h = jnp.mean(out, axis=0)                                 # h.mean(1) over heads
        else:
            h = jnp.transpose(out, (1, 0, 2)).reshape(N, H * D)       # h.flatten(-2)
    return h


# ----------------------------- parameter init ----------------------------- #
def init_params(key, in_size, hid_size, heads):
    """Deterministic synthetic parameters matching dgl.nn.GATConv shapes."""
    params = []
    f_in = in_size
    for i, H in enumerate(heads):
        D = hid_size
        key, kw, kal, kar, krw, kb = jax.random.split(key, 6)
        w = 0.1 * jax.random.normal(kw, (H, f_in, D), dtype=jnp.float32)   # fc weight
        al = 0.1 * jax.random.normal(kal, (H, 1, D), dtype=jnp.float32)    # attn_l
        ar = 0.1 * jax.random.normal(kar, (H, 1, D), dtype=jnp.float32)    # attn_r
        b = 0.1 * jax.random.normal(kb, (H, 1, D), dtype=jnp.float32)      # bias
        if i == 0 or f_in == H * D:
            rw = None                                                       # no residual / Identity
        else:
            rw = 0.1 * jax.random.normal(krw, (H, f_in, D), dtype=jnp.float32)  # res_fc
        params.append((w, al, ar, rw, b))
        f_in = H * D
    return params


if __name__ == "__main__":
    N, in_size, hid_size, out_size = 16, 16, 32, 8
    heads = [4, 4, 2]

    key = jax.random.PRNGKey(0)
    key, kx, kadj = jax.random.split(key, 3)
    x = jax.random.normal(kx, (N, in_size), dtype=jnp.float32)
    adj = (jax.random.uniform(kadj, (N, N)) < 0.3).astype(jnp.float32)
    adj = jnp.maximum(adj, jnp.eye(N, dtype=jnp.float32))     # self-loops: no zero in-degree

    params = init_params(key, in_size, hid_size, heads)
    # TODO(synk): self.liner (nn.Linear(hid_size, out_size)) is created in __init__ but
    # never called in the reference forward(), so it is intentionally not applied here.

    out = gat_forward_pallas(x, adj, params, hid_size)
    out = jax.block_until_ready(out)

    ref = gat_forward_ref(x, adj, params)
    np.testing.assert_allclose(np.asarray(out), np.asarray(ref), rtol=2e-3, atol=2e-3)
    assert out.shape == (N, hid_size)
    print("KERNEL_OK")
</pallas_src>

<mosaic_0001>
module attributes {stable_mosaic.version = 11 : i64} {
  func.func @_fused_gat_kernel(%arg0: i32, %arg1: memref<16x16xf32, #tpu.memory_space<vmem>>, %arg2: memref<16x16xf32, #tpu.memory_space<vmem>>, %arg3: memref<16x132xf32, #tpu.memory_space<vmem>>, %arg4: memref<4x16xf32, #tpu.memory_space<vmem>>, %arg5: memref<1x128xf32, #tpu.memory_space<vmem>>, %arg6: memref<128x132xf32, #tpu.memory_space<vmem>>, %arg7: memref<4x128xf32, #tpu.memory_space<vmem>>, %arg8: memref<1x128xf32, #tpu.memory_space<vmem>>, %arg9: memref<128x66xf32, #tpu.memory_space<vmem>>, %arg10: memref<2x128xf32, #tpu.memory_space<vmem>>, %arg11: memref<128x64xf32, #tpu.memory_space<vmem>>, %arg12: memref<1x64xf32, #tpu.memory_space<vmem>>, %arg13: memref<16x32xf32, #tpu.memory_space<vmem>>) attributes {dimension_semantics = [#tpu.dimension_semantics<arbitrary>], iteration_bounds = array<i64: 1>, scalar_prefetch = 0 : i64, scratch_operands = 0 : i64, tpu.core_type = #tpu.core_type<tc>, window_params = [{pipeline_mode = #tpu.pipeline_mode<synchronous>, transform_indices = @transform_0, window_bounds = array<i64: 16, 16>}, {pipeline_mode = #tpu.pipeline_mode<synchronous>, transform_indices = @transform_1, window_bounds = array<i64: 16, 16>}, {pipeline_mode = #tpu.pipeline_mode<synchronous>, transform_indices = @transform_2, window_bounds = array<i64: 16, 132>}, {pipeline_mode = #tpu.pipeline_mode<synchronous>, transform_indices = @transform_3, window_bounds = array<i64: 4, 16>}, {pipeline_mode = #tpu.pipeline_mode<synchronous>, transform_indices = @transform_4, window_bounds = array<i64: 1, 128>}, {pipeline_mode = #tpu.pipeline_mode<synchronous>, transform_indices = @transform_5, window_bounds = array<i64: 128, 132>}, {pipeline_mode = #tpu.pipeline_mode<synchronous>, transform_indices = @transform_6, window_bounds = array<i64: 4, 128>}, {pipeline_mode = #tpu.pipeline_mode<synchronous>, transform_indices = @transform_7, window_bounds = array<i64: 1, 128>}, {pipeline_mode = #tpu.pipeline_mode<synchronous>, transform_indices = @transform_8, window_bounds = array<i64: 128, 66>}, {pipeline_mode = #tpu.pipeline_mode<synchronous>, transform_indices = @transform_9, window_bounds = array<i64: 2, 128>}, {pipeline_mode = #tpu.pipeline_mode<synchronous>, transform_indices = @transform_10, window_bounds = array<i64: 128, 64>}, {pipeline_mode = #tpu.pipeline_mode<synchronous>, transform_indices = @transform_11, window_bounds = array<i64: 1, 64>}, {pipeline_mode = #tpu.pipeline_mode<synchronous>, transform_indices = @transform_12, window_bounds = array<i64: 16, 32>}]} {
    %c0 = arith.constant 0 : index
    %c0_0 = arith.constant 0 : index
    %0 = vector.load %arg1[%c0, %c0_0] : memref<16x16xf32, #tpu.memory_space<vmem>>, vector<16x16xf32>
    %c0_1 = arith.constant 0 : index
    %c0_2 = arith.constant 0 : index
    %1 = vector.load %arg2[%c0_1, %c0_2] : memref<16x16xf32, #tpu.memory_space<vmem>>, vector<16x16xf32>
    %c0_3 = arith.constant 0 : index
    %c0_4 = arith.constant 0 : index
    %2 = vector.load %arg3[%c0_3, %c0_4] : memref<16x132xf32, #tpu.memory_space<vmem>>, vector<16x132xf32>
    %c0_5 = arith.constant 0 : index
    %c0_6 = arith.constant 0 : index
    %3 = vector.load %arg4[%c0_5, %c0_6] : memref<4x16xf32, #tpu.memory_space<vmem>>, vector<4x16xf32>
    %c0_7 = arith.constant 0 : index
    %c0_8 = arith.constant 0 : index
    %4 = vector.load %arg5[%c0_7, %c0_8] : memref<1x128xf32, #tpu.memory_space<vmem>>, vector<1x128xf32>
    %cst = arith.constant dense<0.000000e+00> : vector<16x132xf32>
    %5 = tpu.matmul %1, %2, %cst {dimension_numbers = #tpu.dot_dimension_numbers<[1], [0], [0], [1], [0, 0, 1, 1], [], []>} : vector<16x16xf32>, vector<16x132xf32>, vector<16x132xf32> -> vector<16x132xf32>
    %6 = vector.extract_strided_slice %5 {offsets = [0, 0], sizes = [16, 128], strides = [1, 1]} : vector<16x132xf32> to vector<16x128xf32>
    %7 = vector.extract_strided_slice %5 {offsets = [0, 128], sizes = [16, 4], strides = [1, 1]} : vector<16x132xf32> to vector<16x4xf32>
    %cst_9 = arith.constant dense<0.000000e+00> : vector<4x16xf32>
    %8 = tpu.matmul %3, %1, %cst_9 {dimension_numbers = #tpu.dot_dimension_numbers<[1], [1], [0], [0], [0, 0, 1, 0], [], []>} : vector<4x16xf32>, vector<16x16xf32>, vector<4x16xf32> -> vector<4x16xf32>
    %9 = vector.extract_strided_slice %7 {offsets = [0, 0], sizes = [16, 1], strides = [1, 1]} : vector<16x4xf32> to vector<16x1xf32>
    %10 = vector.extract_strided_slice %8 {offsets = [0, 0], sizes = [1, 16], strides = [1, 1]} : vector<4x16xf32> to vector<1x16xf32>
    %11 = vector.broadcast %9 : vector<16x1xf32> to vector<16x16xf32>
    %12 = vector.broadcast %10 : vector<1x16xf32> to vector<16x16xf32>
    %13 = arith.addf %11, %12 : vector<16x16xf32>
    %cst_10 = arith.constant 0.000000e+00 : f32
    %14 = vector.broadcast %cst_10 : f32 to vector<16x16xf32>
    %15 = arith.cmpf ogt, %13, %14 : vector<16x16xf32>
    %cst_11 = arith.constant 2.000000e-01 : f32
    %16 = vector.broadcast %cst_11 : f32 to vector<16x16xf32>
    %17 = arith.mulf %16, %13 : vector<16x16xf32>
    %18 = arith.select %15, %13, %17 : vector<16x16xi1>, vector<16x16xf32>
    %19 = arith.addf %18, %0 : vector<16x16xf32>
    %cst_12 = arith.constant dense<0xFF800000> : vector<16xf32>
    %20 = vector.multi_reduction <maximumf>, %19, %cst_12 [1] : vector<16x16xf32> to vector<16xf32>
    %21 = vector.shape_cast %20 : vector<16xf32> to vector<16x1xf32>
    %22 = vector.broadcast %21 : vector<16x1xf32> to vector<16x16xf32>
    %23 = arith.subf %19, %22 : vector<16x16xf32>
    %24 = math.exp %23 : vector<16x16xf32>
    %cst_13 = arith.constant dense<0.000000e+00> : vector<16xf32>
    %25 = vector.multi_reduction <add>, %24, %cst_13 [1] : vector<16x16xf32> to vector<16xf32>
    %26 = vector.shape_cast %25 : vector<16xf32> to vector<16x1xf32>
    %27 = vector.broadcast %26 : vector<16x1xf32> to vector<16x16xf32>
    %28 = arith.divf %24, %27 : vector<16x16xf32>
    %29 = vector.extract_strided_slice %6 {offsets = [0, 0], sizes = [16, 32], strides = [1, 1]} : vector<16x128xf32> to vector<16x32xf32>
    %cst_14 = arith.constant dense<0.000000e+00> : vector<16x32xf32>
    %30 = tpu.matmul %28, %29, %cst_14 {dimension_numbers = #tpu.dot_dimension_numbers<[1], [0], [0], [1], [0, 0, 1, 1], [], []>} : vector<16x16xf32>, vector<16x32xf32>, vector<16x32xf32> -> vector<16x32xf32>
    %31 = vector.extract_strided_slice %7 {offsets = [0, 1], sizes = [16, 1], strides = [1, 1]} : vector<16x4xf32> to vector<16x1xf32>
    %32 = vector.extract_strided_slice %8 {offsets = [1, 0], sizes = [1, 16], strides = [1, 1]} : vector<4x16xf32> to vector<1x16xf32>
    %33 = vector.broadcast %31 : vector<16x1xf32> to vector<16x16xf32>
    %34 = vector.broadcast %32 : vector<1x16xf32> to vector<16x16xf32>
    %35 = arith.addf %33, %34 : vector<16x16xf32>
    %cst_15 = arith.constant 0.000000e+00 : f32
    %36 = vector.broadcast %cst_15 : f32 to vector<16x16xf32>
    %37 = arith.cmpf ogt, %35, %36 : vector<16x16xf32>
    %cst_16 = arith.constant 2.000000e-01 : f32
    %38 = vector.broadcast %cst_16 : f32 to vector<16x16xf32>
    %39 = arith.mulf %38, %35 : vector<16x16xf32>
    %40 = arith.select %37, %35, %39 : vector<16x16xi1>, vector<16x16xf32>
    %41 = arith.addf %40, %0 : vector<16x16xf32>
    %cst_17 = arith.constant dense<0xFF800000> : vector<16xf32>
    %42 = vector.multi_reduction <maximumf>, %41, %cst_17 [1] : vector<16x16xf32> to vector<16xf32>
    %43 = vector.shape_cast %42 : vector<16xf32> to vector<16x1xf32>
    %44 = vector.broadcast %43 : vector<16x1xf32> to vector<16x16xf32>
    %45 = arith.subf %41, %44 : vector<16x16xf32>
    %46 = math.exp %45 : vector<16x16xf32>
    %cst_18 = arith.constant dense<0.000000e+00> : vector<16xf32>
    %47 = vector.multi_reduction <add>, %46, %cst_18 [1] : vector<16x16xf32> to vector<16xf32>
    %48 = vector.shape_cast %47 : vector<16xf32> to vector<16x1xf32>
    %49 = vector.broadcast %48 : vector<16x1xf32> to vector<16x16xf32>
    %50 = arith.divf %46, %49 : vector<16x16xf32>
    %51 = vector.extract_strided_slice %6 {offsets = [0, 32], sizes = [16, 32], strides = [1, 1]} : vector<16x128xf32> to vector<16x32xf32>
    %cst_19 = arith.constant dense<0.000000e+00> : vector<16x32xf32>
    %52 = tpu.matmul %50, %51, %cst_19 {dimension_numbers = #tpu.dot_dimension_numbers<[1], [0], [0], [1], [0, 0, 1, 1], [], []>} : vector<16x16xf32>, vector<16x32xf32>, vector<16x32xf32> -> vector<16x32xf32>
    %53 = vector.extract_strided_slice %7 {offsets = [0, 2], sizes = [16, 1], strides = [1, 1]} : vector<16x4xf32> to vector<16x1xf32>
    %54 = vector.extract_strided_slice %8 {offsets = [2, 0], sizes = [1, 16], strides = [1, 1]} : vector<4x16xf32> to vector<1x16xf32>
    %55 = vector.broadcast %53 : vector<16x1xf32> to vector<16x16xf32>
    %56 = vector.broadcast %54 : vector<1x16xf32> to vector<16x16xf32>
    %57 = arith.addf %55, %56 : vector<16x16xf32>
    %cst_20 = arith.constant 0.000000e+00 : f32
    %58 = vector.broadcast %cst_20 : f32 to vector<16x16xf32>
    %59 = arith.cmpf ogt, %57, %58 : vector<16x16xf32>
    %cst_21 = arith.constant 2.000000e-01 : f32
    %60 = vector.broadcast %cst_21 : f32 to vector<16x16xf32>
    %61 = arith.mulf %60, %57 : vector<16x16xf32>
    %62 = arith.select %59, %57, %61 : vector<16x16xi1>, vector<16x16xf32>
    %63 = arith.addf %62, %0 : vector<16x16xf32>
    %cst_22 = arith.constant dense<0xFF800000> : vector<16xf32>
    %64 = vector.multi_reduction <maximumf>, %63, %cst_22 [1] : vector<16x16xf32> to vector<16xf32>
    %65 = vector.shape_cast %64 : vector<16xf32> to vector<16x1xf32>
    %66 = vector.broadcast %65 : vector<16x1xf32> to vector<16x16xf32>
    %67 = arith.subf %63, %66 : vector<16x16xf32>
    %68 = math.exp %67 : vector<16x16xf32>
    %cst_23 = arith.constant dense<0.000000e+00> : vector<16xf32>
    %69 = vector.multi_reduction <add>, %68, %cst_23 [1] : vector<16x16xf32> to vector<16xf32>
    %70 = vector.shape_cast %69 : vector<16xf32> to vector<16x1xf32>
    %71 = vector.broadcast %70 : vector<16x1xf32> to vector<16x16xf32>
    %72 = arith.divf %68, %71 : vector<16x16xf32>
    %73 = vector.extract_strided_slice %6 {offsets = [0, 64], sizes = [16, 32], strides = [1, 1]} : vector<16x128xf32> to vector<16x32xf32>
    %cst_24 = arith.constant dense<0.000000e+00> : vector<16x32xf32>
    %74 = tpu.matmul %72, %73, %cst_24 {dimension_numbers = #tpu.dot_dimension_numbers<[1], [0], [0], [1], [0, 0, 1, 1], [], []>} : vector<16x16xf32>, vector<16x32xf32>, vector<16x32xf32> -> vector<16x32xf32>
    %75 = vector.extract_strided_slice %7 {offsets = [0, 3], sizes = [16, 1], strides = [1, 1]} : vector<16x4xf32> to vector<16x1xf32>
    %76 = vector.extract_strided_slice %8 {offsets = [3, 0], sizes = [1, 16], strides = [1, 1]} : vector<4x16xf32> to vector<1x16xf32>
    %77 = vector.broadcast %75 : vector<16x1xf32> to vector<16x16xf32>
    %78 = vector.broadcast %76 : vector<1x16xf32> to vector<16x16xf32>
    %79 = arith.addf %77, %78 : vector<16x16xf32>
    %cst_25 = arith.constant 0.000000e+00 : f32
    %80 = vector.broadcast %cst_25 : f32 to vector<16x16xf32>
    %81 = arith.cmpf ogt, %79, %80 : vector<16x16xf32>
    %cst_26 = arith.constant 2.000000e-01 : f32
    %82 = vector.broadcast %cst_26 : f32 to vector<16x16xf32>
    %83 = arith.mulf %82, %79 : vector<16x16xf32>
    %84 = arith.select %81, %79, %83 : vector<16x16xi1>, vector<16x16xf32>
    %85 = arith.addf %84, %0 : vector<16x16xf32>
    %cst_27 = arith.constant dense<0xFF800000> : vector<16xf32>
    %86 = vector.multi_reduction <maximumf>, %85, %cst_27 [1] : vector<16x16xf32> to vector<16xf32>
    %87 = vector.shape_cast %86 : vector<16xf32> to vector<16x1xf32>
    %88 = vector.broadcast %87 : vector<16x1xf32> to vector<16x16xf32>
    %89 = arith.subf %85, %88 : vector<16x16xf32>
    %90 = math.exp %89 : vector<16x16xf32>
    %cst_28 = arith.constant dense<0.000000e+00> : vector<16xf32>
    %91 = vector.multi_reduction <add>, %90, %cst_28 [1] : vector<16x16xf32> to vector<16xf32>
    %92 = vector.shape_cast %91 : vector<16xf32> to vector<16x1xf32>
    %93 = vector.broadcast %92 : vector<16x1xf32> to vector<16x16xf32>
    %94 = arith.divf %90, %93 : vector<16x16xf32>
    %95 = vector.extract_strided_slice %6 {offsets = [0, 96], sizes = [16, 32], strides = [1, 1]} : vector<16x128xf32> to vector<16x32xf32>
    %cst_29 = arith.constant dense<0.000000e+00> : vector<16x32xf32>
    %96 = tpu.matmul %94, %95, %cst_29 {dimension_numbers = #tpu.dot_dimension_numbers<[1], [0], [0], [1], [0, 0, 1, 1], [], []>} : vector<16x16xf32>, vector<16x32xf32>, vector<16x32xf32> -> vector<16x32xf32>
    %97 = tpu.concatenate %30, %52, %74, %96 in 1 : vector<16x32xf32>, vector<16x32xf32>, vector<16x32xf32>, vector<16x32xf32> -> vector<16x128xf32>
    %98 = vector.broadcast %4 : vector<1x128xf32> to vector<16x128xf32>
    %99 = arith.addf %97, %98 : vector<16x128xf32>
    %cst_30 = arith.constant 0.000000e+00 : f32
    %100 = vector.broadcast %cst_30 : f32 to vector<16x128xf32>
    %101 = arith.cmpf ogt, %99, %100 : vector<16x128xf32>
    %102 = math.exp %99 : vector<16x128xf32>
    %cst_31 = arith.constant 1.000000e+00 : f32
    %103 = vector.broadcast %cst_31 : f32 to vector<16x128xf32>
    %104 = arith.subf %102, %103 : vector<16x128xf32>
    %105 = arith.select %101, %99, %104 : vector<16x128xi1>, vector<16x128xf32>
    %c0_32 = arith.constant 0 : index
    %c0_33 = arith.constant 0 : index
    %106 = vector.load %arg6[%c0_32, %c0_33] : memref<128x132xf32, #tpu.memory_space<vmem>>, vector<128x132xf32>
    %c0_34 = arith.constant 0 : index
    %c0_35 = arith.constant 0 : index
    %107 = vector.load %arg7[%c0_34, %c0_35] : memref<4x128xf32, #tpu.memory_space<vmem>>, vector<4x128xf32>
    %c0_36 = arith.constant 0 : index
    %c0_37 = arith.constant 0 : index
    %108 = vector.load %arg8[%c0_36, %c0_37] : memref<1x128xf32, #tpu.memory_space<vmem>>, vector<1x128xf32>
    %cst_38 = arith.constant dense<0.000000e+00> : vector<16x132xf32>
    %109 = tpu.matmul %105, %106, %cst_38 {dimension_numbers = #tpu.dot_dimension_numbers<[1], [0], [0], [1], [0, 0, 1, 1], [], []>} : vector<16x128xf32>, vector<128x132xf32>, vector<16x132xf32> -> vector<16x132xf32>
    %110 = vector.extract_strided_slice %109 {offsets = [0, 0], sizes = [16, 128], strides = [1, 1]} : vector<16x132xf32> to vector<16x128xf32>
    %111 = vector.extract_strided_slice %109 {offsets = [0, 128], sizes = [16, 4], strides = [1, 1]} : vector<16x132xf32> to vector<16x4xf32>
    %cst_39 = arith.constant dense<0.000000e+00> : vector<4x16xf32>
    %112 = tpu.matmul %107, %105, %cst_39 {dimension_numbers = #tpu.dot_dimension_numbers<[1], [1], [0], [0], [0, 0, 1, 0], [], []>} : vector<4x128xf32>, vector<16x128xf32>, vector<4x16xf32> -> vector<4x16xf32>
    %113 = vector.extract_strided_slice %111 {offsets = [0, 0], sizes = [16, 1], strides = [1, 1]} : vector<16x4xf32> to vector<16x1xf32>
    %114 = vector.extract_strided_slice %112 {offsets = [0, 0], sizes = [1, 16], strides = [1, 1]} : vector<4x16xf32> to vector<1x16xf32>
    %115 = vector.broadcast %113 : vector<16x1xf32> to vector<16x16xf32>
    %116 = vector.broadcast %114 : vector<1x16xf32> to vector<16x16xf32>
    %117 = arith.addf %115, %116 : vector<16x16xf32>
    %cst_40 = arith.constant 0.000000e+00 : f32
    %118 = vector.broadcast %cst_40 : f32 to vector<16x16xf32>
    %119 = arith.cmpf ogt, %117, %118 : vector<16x16xf32>
    %cst_41 = arith.constant 2.000000e-01 : f32
    %120 = vector.broadcast %cst_41 : f32 to vector<16x16xf32>
    %121 = arith.mulf %120, %117 : vector<16x16xf32>
    %122 = arith.select %119, %117, %121 : vector<16x16xi1>, vector<16x16xf32>
    %123 = arith.addf %122, %0 : vector<16x16xf32>
    %cst_42 = arith.constant dense<0xFF800000> : vector<16xf32>
    %124 = vector.multi_reduction <maximumf>, %123, %cst_42 [1] : vector<16x16xf32> to vector<16xf32>
    %125 = vector.shape_cast %124 : vector<16xf32> to vector<16x1xf32>
    %126 = vector.broadcast %125 : vector<16x1xf32> to vector<16x16xf32>
    %127 = arith.subf %123, %126 : vector<16x16xf32>
    %128 = math.exp %127 : vector<16x16xf32>
    %cst_43 = arith.constant dense<0.000000e+00> : vector<16xf32>
    %129 = vector.multi_reduction <add>, %128, %cst_43 [1] : vector<16x16xf32> to vector<16xf32>
    %130 = vector.shape_cast %129 : vector<16xf32> to vector<16x1xf32>
    %131 = vector.broadcast %130 : vector<16x1xf32> to vector<16x16xf32>
    %132 = arith.divf %128, %131 : vector<16x16xf32>
    %133 = vector.extract_strided_slice %110 {offsets = [0, 0], sizes = [16, 32], strides = [1, 1]} : vector<16x128xf32> to vector<16x32xf32>
    %cst_44 = arith.constant dense<0.000000e+00> : vector<16x32xf32>
    %134 = tpu.matmul %132, %133, %cst_44 {dimension_numbers = #tpu.dot_dimension_numbers<[1], [0], [0], [1], [0, 0, 1, 1], [], []>} : vector<16x16xf32>, vector<16x32xf32>, vector<16x32xf32> -> vector<16x32xf32>
    %135 = vector.extract_strided_slice %111 {offsets = [0, 1], sizes = [16, 1], strides = [1, 1]} : vector<16x4xf32> to vector<16x1xf32>
    %136 = vector.extract_strided_slice %112 {offsets = [1, 0], sizes = [1, 16], strides = [1, 1]} : vector<4x16xf32> to vector<1x16xf32>
    %137 = vector.broadcast %135 : vector<16x1xf32> to vector<16x16xf32>
    %138 = vector.broadcast %136 : vector<1x16xf32> to vector<16x16xf32>
    %139 = arith.addf %137, %138 : vector<16x16xf32>
    %cst_45 = arith.constant 0.000000e+00 : f32
    %140 = vector.broadcast %cst_45 : f32 to vector<16x16xf32>
    %141 = arith.cmpf ogt, %139, %140 : vector<16x16xf32>
    %cst_46 = arith.constant 2.000000e-01 : f32
    %142 = vector.broadcast %cst_46 : f32 to vector<16x16xf32>
    %143 = arith.mulf %142, %139 : vector<16x16xf32>
    %144 = arith.select %141, %139, %143 : vector<16x16xi1>, vector<16x16xf32>
    %145 = arith.addf %144, %0 : vector<16x16xf32>
    %cst_47 = arith.constant dense<0xFF800000> : vector<16xf32>
    %146 = vector.multi_reduction <maximumf>, %145, %cst_47 [1] : vector<16x16xf32> to vector<16xf32>
    %147 = vector.shape_cast %146 : vector<16xf32> to vector<16x1xf32>
    %148 = vector.broadcast %147 : vector<16x1xf32> to vector<16x16xf32>
    %149 = arith.subf %145, %148 : vector<16x16xf32>
    %150 = math.exp %149 : vector<16x16xf32>
    %cst_48 = arith.constant dense<0.000000e+00> : vector<16xf32>
    %151 = vector.multi_reduction <add>, %150, %cst_48 [1] : vector<16x16xf32> to vector<16xf32>
    %152 = vector.shape_cast %151 : vector<16xf32> to vector<16x1xf32>
    %153 = vector.broadcast %152 : vector<16x1xf32> to vector<16x16xf32>
    %154 = arith.divf %150, %153 : vector<16x16xf32>
    %155 = vector.extract_strided_slice %110 {offsets = [0, 32], sizes = [16, 32], strides = [1, 1]} : vector<16x128xf32> to vector<16x32xf32>
    %cst_49 = arith.constant dense<0.000000e+00> : vector<16x32xf32>
    %156 = tpu.matmul %154, %155, %cst_49 {dimension_numbers = #tpu.dot_dimension_numbers<[1], [0], [0], [1], [0, 0, 1, 1], [], []>} : vector<16x16xf32>, vector<16x32xf32>, vector<16x32xf32> -> vector<16x32xf32>
    %157 = vector.extract_strided_slice %111 {offsets = [0, 2], sizes = [16, 1], strides = [1, 1]} : vector<16x4xf32> to vector<16x1xf32>
    %158 = vector.extract_strided_slice %112 {offsets = [2, 0], sizes = [1, 16], strides = [1, 1]} : vector<4x16xf32> to vector<1x16xf32>
    %159 = vector.broadcast %157 : vector<16x1xf32> to vector<16x16xf32>
    %160 = vector.broadcast %158 : vector<1x16xf32> to vector<16x16xf32>
    %161 = arith.addf %159, %160 : vector<16x16xf32>
    %cst_50 = arith.constant 0.000000e+00 : f32
    %162 = vector.broadcast %cst_50 : f32 to vector<16x16xf32>
    %163 = arith.cmpf ogt, %161, %162 : vector<16x16xf32>
    %cst_51 = arith.constant 2.000000e-01 : f32
    %164 = vector.broadcast %cst_51 : f32 to vector<16x16xf32>
    %165 = arith.mulf %164, %161 : vector<16x16xf32>
    %166 = arith.select %163, %161, %165 : vector<16x16xi1>, vector<16x16xf32>
    %167 = arith.addf %166, %0 : vector<16x16xf32>
    %cst_52 = arith.constant dense<0xFF800000> : vector<16xf32>
    %168 = vector.multi_reduction <maximumf>, %167, %cst_52 [1] : vector<16x16xf32> to vector<16xf32>
    %169 = vector.shape_cast %168 : vector<16xf32> to vector<16x1xf32>
    %170 = vector.broadcast %169 : vector<16x1xf32> to vector<16x16xf32>
    %171 = arith.subf %167, %170 : vector<16x16xf32>
    %172 = math.exp %171 : vector<16x16xf32>
    %cst_53 = arith.constant dense<0.000000e+00> : vector<16xf32>
    %173 = vector.multi_reduction <add>, %172, %cst_53 [1] : vector<16x16xf32> to vector<16xf32>
    %174 = vector.shape_cast %173 : vector<16xf32> to vector<16x1xf32>
    %175 = vector.broadcast %174 : vector<16x1xf32> to vector<16x16xf32>
    %176 = arith.divf %172, %175 : vector<16x16xf32>
    %177 = vector.extract_strided_slice %110 {offsets = [0, 64], sizes = [16, 32], strides = [1, 1]} : vector<16x128xf32> to vector<16x32xf32>
    %cst_54 = arith.constant dense<0.000000e+00> : vector<16x32xf32>
    %178 = tpu.matmul %176, %177, %cst_54 {dimension_numbers = #tpu.dot_dimension_numbers<[1], [0], [0], [1], [0, 0, 1, 1], [], []>} : vector<16x16xf32>, vector<16x32xf32>, vector<16x32xf32> -> vector<16x32xf32>
    %179 = vector.extract_strided_slice %111 {offsets = [0, 3], sizes = [16, 1], strides = [1, 1]} : vector<16x4xf32> to vector<16x1xf32>
    %180 = vector.extract_strided_slice %112 {offsets = [3, 0], sizes = [1, 16], strides = [1, 1]} : vector<4x16xf32> to vector<1x16xf32>
    %181 = vector.broadcast %179 : vector<16x1xf32> to vector<16x16xf32>
    %182 = vector.broadcast %180 : vector<1x16xf32> to vector<16x16xf32>
    %183 = arith.addf %181, %182 : vector<16x16xf32>
    %cst_55 = arith.constant 0.000000e+00 : f32
    %184 = vector.broadcast %cst_55 : f32 to vector<16x16xf32>
    %185 = arith.cmpf ogt, %183, %184 : vector<16x16xf32>
    %cst_56 = arith.constant 2.000000e-01 : f32
    %186 = vector.broadcast %cst_56 : f32 to vector<16x16xf32>
    %187 = arith.mulf %186, %183 : vector<16x16xf32>
    %188 = arith.select %185, %183, %187 : vector<16x16xi1>, vector<16x16xf32>
    %189 = arith.addf %188, %0 : vector<16x16xf32>
    %cst_57 = arith.constant dense<0xFF800000> : vector<16xf32>
    %190 = vector.multi_reduction <maximumf>, %189, %cst_57 [1] : vector<16x16xf32> to vector<16xf32>
    %191 = vector.shape_cast %190 : vector<16xf32> to vector<16x1xf32>
    %192 = vector.broadcast %191 : vector<16x1xf32> to vector<16x16xf32>
    %193 = arith.subf %189, %192 : vector<16x16xf32>
    %194 = math.exp %193 : vector<16x16xf32>
    %cst_58 = arith.constant dense<0.000000e+00> : vector<16xf32>
    %195 = vector.multi_reduction <add>, %194, %cst_58 [1] : vector<16x16xf32> to vector<16xf32>
    %196 = vector.shape_cast %195 : vector<16xf32> to vector<16x1xf32>
    %197 = vector.broadcast %196 : vector<16x1xf32> to vector<16x16xf32>
    %198 = arith.divf %194, %197 : vector<16x16xf32>
    %199 = vector.extract_strided_slice %110 {offsets = [0, 96], sizes = [16, 32], strides = [1, 1]} : vector<16x128xf32> to vector<16x32xf32>
    %cst_59 = arith.constant dense<0.000000e+00> : vector<16x32xf32>
    %200 = tpu.matmul %198, %199, %cst_59 {dimension_numbers = #tpu.dot_dimension_numbers<[1], [0], [0], [1], [0, 0, 1, 1], [], []>} : vector<16x16xf32>, vector<16x32xf32>, vector<16x32xf32> -> vector<16x32xf32>
    %201 = tpu.concatenate %134, %156, %178, %200 in 1 : vector<16x32xf32>, vector<16x32xf32>, vector<16x32xf32>, vector<16x32xf32> -> vector<16x128xf32>
    %202 = arith.addf %201, %105 : vector<16x128xf32>
    %203 = vector.broadcast %108 : vector<1x128xf32> to vector<16x128xf32>
    %204 = arith.addf %202, %203 : vector<16x128xf32>
    %cst_60 = arith.constant 0.000000e+00 : f32
    %205 = vector.broadcast %cst_60 : f32 to vector<16x128xf32>
    %206 = arith.cmpf ogt, %204, %205 : vector<16x128xf32>
    %207 = math.exp %204 : vector<16x128xf32>
    %cst_61 = arith.constant 1.000000e+00 : f32
    %208 = vector.broadcast %cst_61 : f32 to vector<16x128xf32>
    %209 = arith.subf %207, %208 : vector<16x128xf32>
    %210 = arith.select %206, %204, %209 : vector<16x128xi1>, vector<16x128xf32>
    %c0_62 = arith.constant 0 : index
    %c0_63 = arith.constant 0 : index
    %211 = vector.load %arg9[%c0_62, %c0_63] : memref<128x66xf32, #tpu.memory_space<vmem>>, vector<128x66xf32>
    %c0_64 = arith.constant 0 : index
    %c0_65 = arith.constant 0 : index
    %212 = vector.load %arg10[%c0_64, %c0_65] : memref<2x128xf32, #tpu.memory_space<vmem>>, vector<2x128xf32>
    %c0_66 = arith.constant 0 : index
    %c0_67 = arith.constant 0 : index
    %213 = vector.load %arg12[%c0_66, %c0_67] : memref<1x64xf32, #tpu.memory_space<vmem>>, vector<1x64xf32>
    %c0_68 = arith.constant 0 : index
    %c0_69 = arith.constant 0 : index
    %214 = vector.load %arg11[%c0_68, %c0_69] : memref<128x64xf32, #tpu.memory_space<vmem>>, vector<128x64xf32>
    %cst_70 = arith.constant dense<0.000000e+00> : vector<16x66xf32>
    %215 = tpu.matmul %210, %211, %cst_70 {dimension_numbers = #tpu.dot_dimension_numbers<[1], [0], [0], [1], [0, 0, 1, 1], [], []>} : vector<16x128xf32>, vector<128x66xf32>, vector<16x66xf32> -> vector<16x66xf32>
    %216 = vector.extract_strided_slice %215 {offsets = [0, 0], sizes = [16, 64], strides = [1, 1]} : vector<16x66xf32> to vector<16x64xf32>
    %217 = vector.extract_strided_slice %215 {offsets = [0, 64], sizes = [16, 2], strides = [1, 1]} : vector<16x66xf32> to vector<16x2xf32>
    %cst_71 = arith.constant dense<0.000000e+00> : vector<2x16xf32>
    %218 = tpu.matmul %212, %210, %cst_71 {dimension_numbers = #tpu.dot_dimension_numbers<[1], [1], [0], [0], [0, 0, 1, 0], [], []>} : vector<2x128xf32>, vector<16x128xf32>, vector<2x16xf32> -> vector<2x16xf32>
    %219 = vector.extract_strided_slice %217 {offsets = [0, 0], sizes = [16, 1], strides = [1, 1]} : vector<16x2xf32> to vector<16x1xf32>
    %220 = vector.extract_strided_slice %218 {offsets = [0, 0], sizes = [1, 16], strides = [1, 1]} : vector<2x16xf32> to vector<1x16xf32>
    %221 = vector.broadcast %219 : vector<16x1xf32> to vector<16x16xf32>
    %222 = vector.broadcast %220 : vector<1x16xf32> to vector<16x16xf32>
    %223 = arith.addf %221, %222 : vector<16x16xf32>
    %cst_72 = arith.constant 0.000000e+00 : f32
    %224 = vector.broadcast %cst_72 : f32 to vector<16x16xf32>
    %225 = arith.cmpf ogt, %223, %224 : vector<16x16xf32>
    %cst_73 = arith.constant 2.000000e-01 : f32
    %226 = vector.broadcast %cst_73 : f32 to vector<16x16xf32>
    %227 = arith.mulf %226, %223 : vector<16x16xf32>
    %228 = arith.select %225, %223, %227 : vector<16x16xi1>, vector<16x16xf32>
    %229 = arith.addf %228, %0 : vector<16x16xf32>
    %cst_74 = arith.constant dense<0xFF800000> : vector<16xf32>
    %230 = vector.multi_reduction <maximumf>, %229, %cst_74 [1] : vector<16x16xf32> to vector<16xf32>
    %231 = vector.shape_cast %230 : vector<16xf32> to vector<16x1xf32>
    %232 = vector.broadcast %231 : vector<16x1xf32> to vector<16x16xf32>
    %233 = arith.subf %229, %232 : vector<16x16xf32>
    %234 = math.exp %233 : vector<16x16xf32>
    %cst_75 = arith.constant dense<0.000000e+00> : vector<16xf32>
    %235 = vector.multi_reduction <add>, %234, %cst_75 [1] : vector<16x16xf32> to vector<16xf32>
    %236 = vector.shape_cast %235 : vector<16xf32> to vector<16x1xf32>
    %237 = vector.broadcast %236 : vector<16x1xf32> to vector<16x16xf32>
    %238 = arith.divf %234, %237 : vector<16x16xf32>
    %239 = vector.extract_strided_slice %216 {offsets = [0, 0], sizes = [16, 32], strides = [1, 1]} : vector<16x64xf32> to vector<16x32xf32>
    %cst_76 = arith.constant dense<0.000000e+00> : vector<16x32xf32>
    %240 = tpu.matmul %238, %239, %cst_76 {dimension_numbers = #tpu.dot_dimension_numbers<[1], [0], [0], [1], [0, 0, 1, 1], [], []>} : vector<16x16xf32>, vector<16x32xf32>, vector<16x32xf32> -> vector<16x32xf32>
    %241 = vector.extract_strided_slice %217 {offsets = [0, 1], sizes = [16, 1], strides = [1, 1]} : vector<16x2xf32> to vector<16x1xf32>
    %242 = vector.extract_strided_slice %218 {offsets = [1, 0], sizes = [1, 16], strides = [1, 1]} : vector<2x16xf32> to vector<1x16xf32>
    %243 = vector.broadcast %241 : vector<16x1xf32> to vector<16x16xf32>
    %244 = vector.broadcast %242 : vector<1x16xf32> to vector<16x16xf32>
    %245 = arith.addf %243, %244 : vector<16x16xf32>
    %cst_77 = arith.constant 0.000000e+00 : f32
    %246 = vector.broadcast %cst_77 : f32 to vector<16x16xf32>
    %247 = arith.cmpf ogt, %245, %246 : vector<16x16xf32>
    %cst_78 = arith.constant 2.000000e-01 : f32
    %248 = vector.broadcast %cst_78 : f32 to vector<16x16xf32>
    %249 = arith.mulf %248, %245 : vector<16x16xf32>
    %250 = arith.select %247, %245, %249 : vector<16x16xi1>, vector<16x16xf32>
    %251 = arith.addf %250, %0 : vector<16x16xf32>
    %cst_79 = arith.constant dense<0xFF800000> : vector<16xf32>
    %252 = vector.multi_reduction <maximumf>, %251, %cst_79 [1] : vector<16x16xf32> to vector<16xf32>
    %253 = vector.shape_cast %252 : vector<16xf32> to vector<16x1xf32>
    %254 = vector.broadcast %253 : vector<16x1xf32> to vector<16x16xf32>
    %255 = arith.subf %251, %254 : vector<16x16xf32>
    %256 = math.exp %255 : vector<16x16xf32>
    %cst_80 = arith.constant dense<0.000000e+00> : vector<16xf32>
    %257 = vector.multi_reduction <add>, %256, %cst_80 [1] : vector<16x16xf32> to vector<16xf32>
    %258 = vector.shape_cast %257 : vector<16xf32> to vector<16x1xf32>
    %259 = vector.broadcast %258 : vector<16x1xf32> to vector<16x16xf32>
    %260 = arith.divf %256, %259 : vector<16x16xf32>
    %261 = vector.extract_strided_slice %216 {offsets = [0, 32], sizes = [16, 32], strides = [1, 1]} : vector<16x64xf32> to vector<16x32xf32>
    %cst_81 = arith.constant dense<0.000000e+00> : vector<16x32xf32>
    %262 = tpu.matmul %260, %261, %cst_81 {dimension_numbers = #tpu.dot_dimension_numbers<[1], [0], [0], [1], [0, 0, 1, 1], [], []>} : vector<16x16xf32>, vector<16x32xf32>, vector<16x32xf32> -> vector<16x32xf32>
    %263 = tpu.concatenate %240, %262 in 1 : vector<16x32xf32>, vector<16x32xf32> -> vector<16x64xf32>
    %cst_82 = arith.constant dense<0.000000e+00> : vector<16x64xf32>
    %264 = tpu.matmul %210, %214, %cst_82 {dimension_numbers = #tpu.dot_dimension_numbers<[1], [0], [0], [1], [0, 0, 1, 1], [], []>} : vector<16x128xf32>, vector<128x64xf32>, vector<16x64xf32> -> vector<16x64xf32>
    %265 = arith.addf %263, %264 : vector<16x64xf32>
    %266 = vector.broadcast %213 : vector<1x64xf32> to vector<16x64xf32>
    %267 = arith.addf %265, %266 : vector<16x64xf32>
    %cst_83 = arith.constant 0.000000e+00 : f32
    %268 = vector.broadcast %cst_83 : f32 to vector<16x64xf32>
    %269 = arith.cmpf ogt, %267, %268 : vector<16x64xf32>
    %270 = math.exp %267 : vector<16x64xf32>
    %cst_84 = arith.constant 1.000000e+00 : f32
    %271 = vector.broadcast %cst_84 : f32 to vector<16x64xf32>
    %272 = arith.subf %270, %271 : vector<16x64xf32>
    %273 = arith.select %269, %267, %272 : vector<16x64xi1>, vector<16x64xf32>
    %274 = vector.extract_strided_slice %273 {offsets = [0, 0], sizes = [16, 32], strides = [1, 1]} : vector<16x64xf32> to vector<16x32xf32>
    %275 = vector.extract_strided_slice %273 {offsets = [0, 32], sizes = [16, 32], strides = [1, 1]} : vector<16x64xf32> to vector<16x32xf32>
    %276 = arith.addf %274, %275 : vector<16x32xf32>
    %cst_85 = arith.constant 5.000000e-01 : f32
    %277 = vector.broadcast %cst_85 : f32 to vector<16x32xf32>
    %278 = arith.mulf %276, %277 : vector<16x32xf32>
    %c0_86 = arith.constant 0 : index
    %c0_87 = arith.constant 0 : index
    %279 = vector.load %arg13[%c0_86, %c0_87] : memref<16x32xf32, #tpu.memory_space<vmem>>, vector<16x32xf32>
    tpu.vector_store %arg13[%c0_86, %c0_87], %278 {strides = array<i32>} : memref<16x32xf32, #tpu.memory_space<vmem>>, vector<16x32xf32>,
    return
  }
  func.func @transform_0(%arg0: i32) -> (i32, i32) {
    %c0_i32 = arith.constant 0 : i32
    %c0_i32_0 = arith.constant 0 : i32
    %c0_i32_1 = arith.constant 0 : i32
    return %c0_i32, %c0_i32_0 : i32, i32
  }
  func.func @transform_1(%arg0: i32) -> (i32, i32) {
    %c0_i32 = arith.constant 0 : i32
    %c0_i32_0 = arith.constant 0 : i32
    %c0_i32_1 = arith.constant 0 : i32
    return %c0_i32, %c0_i32_0 : i32, i32
  }
  func.func @transform_2(%arg0: i32) -> (i32, i32) {
    %c0_i32 = arith.constant 0 : i32
    %c0_i32_0 = arith.constant 0 : i32
    %c0_i32_1 = arith.constant 0 : i32
    return %c0_i32, %c0_i32_0 : i32, i32
  }
  func.func @transform_3(%arg0: i32) -> (i32, i32) {
    %c0_i32 = arith.constant 0 : i32
    %c0_i32_0 = arith.constant 0 : i32
    %c0_i32_1 = arith.constant 0 : i32
    return %c0_i32, %c0_i32_0 : i32, i32
  }
  func.func @transform_4(%arg0: i32) -> (i32, i32) {
    %c0_i32 = arith.constant 0 : i32
    %c0_i32_0 = arith.constant 0 : i32
    %c0_i32_1 = arith.constant 0 : i32
    return %c0_i32, %c0_i32_0 : i32, i32
  }
  func.func @transform_5(%arg0: i32) -> (i32, i32) {
    %c0_i32 = arith.constant 0 : i32
    %c0_i32_0 = arith.constant 0 : i32
    %c0_i32_1 = arith.constant 0 : i32
    return %c0_i32, %c0_i32_0 : i32, i32
  }
  func.func @transform_6(%arg0: i32) -> (i32, i32) {
    %c0_i32 = arith.constant 0 : i32
    %c0_i32_0 = arith.constant 0 : i32
    %c0_i32_1 = arith.constant 0 : i32
    return %c0_i32, %c0_i32_0 : i32, i32
  }
  func.func @transform_7(%arg0: i32) -> (i32, i32) {
    %c0_i32 = arith.constant 0 : i32
    %c0_i32_0 = arith.constant 0 : i32
    %c0_i32_1 = arith.constant 0 : i32
    return %c0_i32, %c0_i32_0 : i32, i32
  }
  func.func @transform_8(%arg0: i32) -> (i32, i32) {
    %c0_i32 = arith.constant 0 : i32
    %c0_i32_0 = arith.constant 0 : i32
    %c0_i32_1 = arith.constant 0 : i32
    return %c0_i32, %c0_i32_0 : i32, i32
  }
  func.func @transform_9(%arg0: i32) -> (i32, i32) {
    %c0_i32 = arith.constant 0 : i32
    %c0_i32_0 = arith.constant 0 : i32
    %c0_i32_1 = arith.constant 0 : i32
    return %c0_i32, %c0_i32_0 : i32, i32
  }
  func.func @transform_10(%arg0: i32) -> (i32, i32) {
    %c0_i32 = arith.constant 0 : i32
    %c0_i32_0 = arith.constant 0 : i32
    %c0_i32_1 = arith.constant 0 : i32
    return %c0_i32, %c0_i32_0 : i32, i32
  }
  func.func @transform_11(%arg0: i32) -> (i32, i32) {
    %c0_i32 = arith.constant 0 : i32
    %c0_i32_0 = arith.constant 0 : i32
    %c0_i32_1 = arith.constant 0 : i32
    return %c0_i32, %c0_i32_0 : i32, i32
  }
  func.func @transform_12(%arg0: i32) -> (i32, i32) {
    %c0_i32 = arith.constant 0 : i32
    %c0_i32_0 = arith.constant 0 : i32
    %c0_i32_1 = arith.constant 0 : i32
    return %c0_i32, %c0_i32_0 : i32, i32
  }
}

</mosaic_0001>

<llo_original>
// kernel: tpu_custom_call.1
$region0: #{tpu_custom_call.1}
  #allocation0 [shape = 'u32[]', space=smem, size = 0x4, offset = 0x4, fixed_abs, tag = 'smem constant byte address 0x4 - core index']
  #allocation1 [shape = 'u32[144,128]{1,0:T(1,128)}', space=vmem, size = 0x12000, scoped, tag = 'internal scratch']
  %s0 = inlined_call_operand.vmem [shape: f32[16,16], index: 0, kind: input, shape index: {}]
  %s1 = inlined_call_operand.vmem [shape: f32[16,16], index: 1, kind: input, shape index: {}]
  %s2 = inlined_call_operand.vmem [shape: f32[16,132], index: 2, kind: input, shape index: {}]
  %s3 = inlined_call_operand.vmem [shape: f32[4,16], index: 3, kind: input, shape index: {}]
  %s4 = inlined_call_operand.vmem [shape: f32[1,128], index: 4, kind: input, shape index: {}]
  %s5 = inlined_call_operand.vmem [shape: f32[128,132], index: 5, kind: input, shape index: {}]
  %s6 = inlined_call_operand.vmem [shape: f32[4,128], index: 6, kind: input, shape index: {}]
  %s7 = inlined_call_operand.vmem [shape: f32[1,128], index: 7, kind: input, shape index: {}]
  %s8 = inlined_call_operand.vmem [shape: f32[128,66], index: 8, kind: input, shape index: {}]
  %s9 = inlined_call_operand.vmem [shape: f32[2,128], index: 9, kind: input, shape index: {}]
  %s10 = inlined_call_operand.vmem [shape: f32[128,64], index: 10, kind: input, shape index: {}]
  %s11 = inlined_call_operand.vmem [shape: f32[1,64], index: 11, kind: input, shape index: {}]
  %s12 = inlined_call_operand.hbm [shape: f32[16,32], index: 12, kind: output, shape index: {}]
  %s13 = sld [smem:[#allocation0]]
  $region58: #{tpu_custom_call.1} parent=0
    _
  %s15 = ssub.s32 1, %s13
  %s16 = scalar_select 0, %s15, %s13
  $region1: #{tpu_custom_call.1} parent=0
    #allocation2 [shape = 'u8[8192]{0}', space=vmem, size = 0x2000, scoped, tag = 'output window, operand 0, single buffered']
    #allocation3 [shape = 's32[1]{0}', space=sflag, size = 0x4, scoped, tag = 'scoped memory for tpu_custom_call.1']
    %17 = vsyncpa [#allocation3], 0
    // Predicated region
    $region2: #{tpu_custom_call.1} parent=1 // pred_check
      _
    $region3: #{tpu_custom_call.1} parent=1 // pred_check_branch
      %19 = sbr.rel (0) target = $region5
    $region4: #{tpu_custom_call.1} parent=1 // pred_region
      _
    $region5: #{tpu_custom_call.1} parent=1 // pred_fallthru
      _
    // Predicated region
    $region6: #{tpu_custom_call.1} parent=1 // pred_check
      _
    $region7: #{tpu_custom_call.1} parent=1 // pred_check_branch
      %21 = sbr.rel (0) target = $region9
    $region8: #{tpu_custom_call.1} parent=1 // pred_region
      _
    $region9: #{tpu_custom_call.1} parent=1 // pred_fallthru
      _
    // Predicated region
    $region10: #{tpu_custom_call.1} parent=1 // pred_check
      _
    $region11: #{tpu_custom_call.1} parent=1 // pred_check_branch
      %23 = sbr.rel (0) target = $region13
    $region12: #{tpu_custom_call.1} parent=1 // pred_region
      _
    $region13: #{tpu_custom_call.1} parent=1 // pred_fallthru
      _
    // Predicated region
    $region14: #{tpu_custom_call.1} parent=1 // pred_check
      _
    $region15: #{tpu_custom_call.1} parent=1 // pred_check_branch
      %25 = sbr.rel (0) target = $region17
    $region16: #{tpu_custom_call.1} parent=1 // pred_region
      _
    $region17: #{tpu_custom_call.1} parent=1 // pred_fallthru
      _
    // Predicated region
    $region18: #{tpu_custom_call.1} parent=1 // pred_check
      _
    $region19: #{tpu_custom_call.1} parent=1 // pred_check_branch
      %27 = sbr.rel (0) target = $region21
    $region20: #{tpu_custom_call.1} parent=1 // pred_region
      _
    $region21: #{tpu_custom_call.1} parent=1 // pred_fallthru
      _
    // Predicated region
    $region22: #{tpu_custom_call.1} parent=1 // pred_check
      _
    $region23: #{tpu_custom_call.1} parent=1 // pred_check_branch
      %29 = sbr.rel (0) target = $region25
    $region24: #{tpu_custom_call.1} parent=1 // pred_region
      _
    $region25: #{tpu_custom_call.1} parent=1 // pred_fallthru
      _
    // Predicated region
    $region26: #{tpu_custom_call.1} parent=1 // pred_check
      _
    $region27: #{tpu_custom_call.1} parent=1 // pred_check_branch
      %31 = sbr.rel (0) target = $region29
    $region28: #{tpu_custom_call.1} parent=1 // pred_region
      _
    $region29: #{tpu_custom_call.1} parent=1 // pred_fallthru
      _
    // Predicated region
    $region30: #{tpu_custom_call.1} parent=1 // pred_check
      _
    $region31: #{tpu_custom_call.1} parent=1 // pred_check_branch
      %33 = sbr.rel (0) target = $region33
    $region32: #{tpu_custom_call.1} parent=1 // pred_region
      _
    $region33: #{tpu_custom_call.1} parent=1 // pred_fallthru
      _
    // Predicated region
    $region34: #{tpu_custom_call.1} parent=1 // pred_check
      _
    $region35: #{tpu_custom_call.1} parent=1 // pred_check_branch
      %35 = sbr.rel (0) target = $region37
    $region36: #{tpu_custom_call.1} parent=1 // pred_region
      _
    $region37: #{tpu_custom_call.1} parent=1 // pred_fallthru
      _
    // Predicated region
    $region38: #{tpu_custom_call.1} parent=1 // pred_check
      _
    $region39: #{tpu_custom_call.1} parent=1 // pred_check_branch
      %37 = sbr.rel (0) target = $region41
    $region40: #{tpu_custom_call.1} parent=1 // pred_region
      _
    $region41: #{tpu_custom_call.1} parent=1 // pred_fallthru
      _
    // Predicated region
    $region42: #{tpu_custom_call.1} parent=1 // pred_check
      _
    $region43: #{tpu_custom_call.1} parent=1 // pred_check_branch
      %39 = sbr.rel (0) target = $region45
    $region44: #{tpu_custom_call.1} parent=1 // pred_region
      _
    $region45: #{tpu_custom_call.1} parent=1 // pred_fallthru
      _
    // Predicated region
    $region46: #{tpu_custom_call.1} parent=1 // pred_check
      _
    $region47: #{tpu_custom_call.1} parent=1 // pred_check_branch
      %41 = sbr.rel (0) target = $region49
    $region48: #{tpu_custom_call.1} parent=1 // pred_region
      _
    $region49: #{tpu_custom_call.1} parent=1 // pred_fallthru
      _
    %v42 = vld [vmem:[%s0] sm:$0xff]
    %v43 = vld [vmem:[%s0 + $0x8] sm:$0xff]
    %v44 = vld [vmem:[%s1] sm:$0xff]
    %v45 = vld [vmem:[%s1 + $0x8] sm:$0xff]
    %v46 = vld [vmem:[%s2] sm:$0xff]
    %v47 = vld [vmem:[%s2 + $0x8] sm:$0xff]
    %v48 = vld [vmem:[%s2 + $0x10] sm:$0xff]
    %v49 = vld [vmem:[%s2 + $0x18] sm:$0xff]
    %v50 = vld [vmem:[%s3] sm:$0xf]
    %v51 = vld [vmem:[%s4] sm:$0x1]
    %vm52 = vcmask 130048
    %v54 = vsel %vm52, %v44, 0
    %v57 = vsel %vm52, %v45, 0
    %59 = vmatprep.subr.mxu0 %v47
    %60 = vmatpush1.msra.mxu0 %v46
    %61 = vmatprep.subr.mxu0 %v49
    %62 = vmatpush1.msra.mxu0 %v48
    %63 = vmatprep.subr.mxu0 0.0
    %64 = vmatpush1.msra.mxu0 0.0
    %65 = vmatprep.subr.mxu0 0.0
    %66 = vmatpush1.msra.mxu0 0.0
    %67 = vmatprep.subr.mxu0 0.0
    %68 = vmatpush1.msra.mxu0 0.0
    %69 = vmatprep.subr.mxu0 0.0
    %70 = vmatpush1.msra.mxu0 0.0
    %71 = vmatprep.subr.mxu0 0.0
    %72 = vmatpush1.msra.mxu0 0.0
    %73 = vmatprep.subr.mxu0 0.0
    %74 = vmatpush1.msra.mxu0 0.0
    %75 = vmatprep.subr.mxu0 0.0
    %76 = vmatpush1.msra.mxu0 0.0
    %77 = vmatprep.subr.mxu0 0.0
    %78 = vmatpush1.msra.mxu0 0.0
    %79 = vmatprep.subr.mxu0 0.0
    %80 = vmatpush1.msra.mxu0 0.0
    %81 = vmatprep.subr.mxu0 0.0
    %82 = vmatpush1.msra.mxu0 0.0
    %83 = vmatprep.subr.mxu0 0.0
    %84 = vmatpush1.msra.mxu0 0.0
    %85 = vmatprep.subr.mxu0 0.0
    %86 = vmatpush1.msra.mxu0 0.0
    %87 = vmatprep.subr.mxu0 0.0
    %88 = vmatpush1.msra.mxu0 0.0
    %89 = vmatprep.subr.mxu0 0.0
    %90 = vmatpush1.msra.mxu0 0.0
    %91 = vmatprep.subr.mxu0 0.0
    %92 = vmatpush1.msra.mxu0 0.0
    %93 = vmatprep.subr.mxu0 0.0
    %94 = vmatpush1.msra.mxu0 0.0
    %95 = vmatprep.subr.mxu0 0.0
    %96 = vmatpush1.msra.mxu0 0.0
    %97 = vmatprep.subr.mxu0 0.0
    %98 = vmatpush1.msra.mxu0 0.0
    %99 = vmatprep.subr.mxu0 0.0
    %100 = vmatpush1.msra.mxu0 0.0
    %101 = vmatprep.subr.mxu0 0.0
    %102 = vmatpush1.msra.mxu0 0.0
    %103 = vmatprep.subr.mxu0 0.0
    %104 = vmatpush1.msra.mxu0 0.0
    %105 = vmatprep.subr.mxu0 0.0
    %106 = vmatpush1.msra.mxu0 0.0
    %107 = vmatprep.subr.mxu0 0.0
    %108 = vmatpush1.msra.mxu0 0.0
    %109 = vmatprep.subr.mxu0 0.0
    %110 = vmatpush1.msra.mxu0 0.0
    %111 = vmatprep.subr.mxu0 0.0
    %112 = vmatpush1.msra.mxu0 0.0
    %113 = vmatprep.subr.mxu0 0.0
    %114 = vmatpush1.msra.mxu0 0.0
    %115 = vmatprep.subr.mxu0 0.0
    %116 = vmatpush1.msra.mxu0 0.0
    %117 = vmatprep.subr.mxu0 0.0
    %118 = vmatpush1.msra.mxu0 0.0
    %119 = vmatprep.subr.mxu0 0.0
    %120 = vmatpush1.msra.mxu0 0.0
    %121 = vmatprep.subr.mxu0 0.0
    %122 = vmatpush1.msra.mxu0 0.0
    %123 = vmatprep.mubr.f32.mxu0 0.0
    %124 = vmatmul.mubr.f32.gmra.mrb[0].mxu0 %v54
    %v125 = vpop.f32.mrb[0].mxu0
    %v126 = vadd.f32 0.0, %v125
    %v127 = vpop.f32.mrb[0].mxu0
    %v128 = vadd.f32 0.0, %v127
    %129 = vmatprep.mubr.f32.mxu0 0.0
    %130 = vmatmul.mubr.f32.gmra.mrb[0].mxu0 %v57
    %v131 = vpop.f32.mrb[0].mxu0
    %v132 = vadd.f32 0.0, %v131
    %v133 = vpop.f32.mrb[0].mxu0
    %v134 = vadd.f32 0.0, %v133
    %135 = vdwg.mxu0
    %v137 = vsel %vm52, %v50, 0
    %139 = vmatprep.subr.mxu0 0.0
    %140 = vmatpush1.xpose.msra.mxu0 %v54
    %141 = vmatprep.subr.mxu0 0.0
    %142 = vmatpush1.xpose.msra.mxu0 %v57
    %143 = vmatprep.subr.mxu0 0.0
    %144 = vmatpush1.xpose.msra.mxu0 0.0
    %145 = vmatprep.subr.mxu0 0.0
    %146 = vmatpush1.xpose.msra.mxu0 0.0
    %147 = vmatprep.subr.mxu0 0.0
    %148 = vmatpush1.xpose.msra.mxu0 0.0
    %149 = vmatprep.subr.mxu0 0.0
    %150 = vmatpush1.xpose.msra.mxu0 0.0
    %151 = vmatprep.subr.mxu0 0.0
    %152 = vmatpush1.xpose.msra.mxu0 0.0
    %153 = vmatprep.subr.mxu0 0.0
    %154 = vmatpush1.xpose.msra.mxu0 0.0
    %155 = vmatprep.subr.mxu0 0.0
    %156 = vmatpush1.xpose.msra.mxu0 0.0
    %157 = vmatprep.subr.mxu0 0.0
    %158 = vmatpush1.xpose.msra.mxu0 0.0
    %159 = vmatprep.subr.mxu0 0.0
    %160 = vmatpush1.xpose.msra.mxu0 0.0
    %161 = vmatprep.subr.mxu0 0.0
    %162 = vmatpush1.xpose.msra.mxu0 0.0
    %163 = vmatprep.subr.mxu0 0.0
    %164 = vmatpush1.xpose.msra.mxu0 0.0
    %165 = vmatprep.subr.mxu0 0.0
    %166 = vmatpush1.xpose.msra.mxu0 0.0
    %167 = vmatprep.subr.mxu0 0.0
    %168 = vmatpush1.xpose.msra.mxu0 0.0
    %169 = vmatprep.subr.mxu0 0.0
    %170 = vmatpush1.xpose.msra.mxu0 0.0
    %171 = vmatprep.subr.mxu0 0.0
    %172 = vmatpush1.xpose.msra.mxu0 0.0
    %173 = vmatprep.subr.mxu0 0.0
    %174 = vmatpush1.xpose.msra.mxu0 0.0
    %175 = vmatprep.subr.mxu0 0.0
    %176 = vmatpush1.xpose.msra.mxu0 0.0
    %177 = vmatprep.subr.mxu0 0.0
    %178 = vmatpush1.xpose.msra.mxu0 0.0
    %179 = vmatprep.subr.mxu0 0.0
    %180 = vmatpush1.xpose.msra.mxu0 0.0
    %181 = vmatprep.subr.mxu0 0.0
    %182 = vmatpush1.xpose.msra.mxu0 0.0
    %183 = vmatprep.subr.mxu0 0.0
    %184 = vmatpush1.xpose.msra.mxu0 0.0
    %185 = vmatprep.subr.mxu0 0.0
    %186 = vmatpush1.xpose.msra.mxu0 0.0
    %187 = vmatprep.subr.mxu0 0.0
    %188 = vmatpush1.xpose.msra.mxu0 0.0
    %189 = vmatprep.subr.mxu0 0.0
    %190 = vmatpush1.xpose.msra.mxu0 0.0
    %191 = vmatprep.subr.mxu0 0.0
    %192 = vmatpush1.xpose.msra.mxu0 0.0
    %193 = vmatprep.subr.mxu0 0.0
    %194 = vmatpush1.xpose.msra.mxu0 0.0
    %195 = vmatprep.subr.mxu0 0.0
    %196 = vmatpush1.xpose.msra.mxu0 0.0
    %197 = vmatprep.subr.mxu0 0.0
    %198 = vmatpush1.xpose.msra.mxu0 0.0
    %199 = vmatprep.subr.mxu0 0.0
    %200 = vmatpush1.xpose.msra.mxu0 0.0
    %201 = vmatprep.subr.mxu0 0.0
    %202 = vmatpush1.xpose.msra.mxu0 0.0
    %203 = vmatprep.mubr.f32.mxu0 0.0
    %204 = vmatmul.mubr.f32.gmra.mrb[0].mxu0 %v137
    %v205 = vpop.f32.mrb[0].mxu0
    %v206 = vadd.f32 0.0, %v205
    %v207 = vpop.f32.mrb[0].mxu0
    %208 = vdwg.mxu0
    %210 = vset.pattern.permute.xlu0 0
    %211 = vperm.xlu0 %210, %v128
    %v212 = vpop.permute.xlu0 %211
    %215 = vset.pattern.permute.xlu0 0
    %216 = vperm.xlu0 %215, %v134
    %v217 = vpop.permute.xlu0 %216
    %v219 = vlaneseq
    %v220 = vshrl.u32 %v219, 7
    %v221 = vsub.s32 0, %v220
    %v222 = vrot.slane %v206, %v221
    %v223 = vadd.f32 %v212, %v222
    %v224 = vadd.f32 %v217, %v222
    %vm225 = vcmp.gt.f32.partialorder %v223, 0.0
    %vm226 = vcmp.gt.f32.partialorder %v224, 0.0
    %v227 = vmul.f32 %v223, 0.2
    %v228 = vmul.f32 %v224, 0.2
    %v229 = vsel %vm225, %v223, %v227
    %v230 = vsel %vm226, %v224, %v228
    %v231 = vadd.f32 %v229, %v42
    %v232 = vadd.f32 %v230, %v43
    %v233 = vsel %vm52, %v231, -inf
    %234 = vmax.xlane.f32.xlu0 %v233
    %v235 = vpop.xlane.xlu0 %234
    %v236 = vsel %vm52, %v232, -inf
    %237 = vmax.xlane.f32.xlu0 %v236
    %v238 = vpop.xlane.xlu0 %237
    %v239 = vsub.f32 %v231, %v235
    %v240 = vsub.f32 %v232, %v238
    %v241 = vmul.f32 %v239, 1.442695
    %v242 = vpow.pop %v241
    %v243 = vmul.f32 %v240, 1.442695
    %v244 = vpow.pop %v243
    %v245 = vsel %vm52, %v242, 0.0
    %246 = vadd.xlane.f32.xlu0 %v245
    %v247 = vpop.xlane.xlu0 %246
    %v248 = vsel %vm52, %v244, 0.0
    %249 = vadd.xlane.f32.xlu0 %v248
    %v250 = vpop.xlane.xlu0 %249
    %v251 = vrcp.pop %v247
    %v252 = vmul.f32 %v242, %v251
    %v253 = vrcp.pop %v250
    %v254 = vmul.f32 %v244, %v253
    %v256 = vsel %vm52, %v252, 0
    %v259 = vsel %vm52, %v254, 0
    %261 = vmatprep.subr.mxu0 0.0
    %262 = vmatpush1.msra.mxu0 %v126
    %263 = vmatprep.subr.mxu0 0.0
    %264 = vmatpush1.msra.mxu0 %v132
    %265 = vmatprep.subr.mxu0 0.0
    %266 = vmatpush1.msra.mxu0 0.0
    %267 = vmatprep.subr.mxu0 0.0
    %268 = vmatpush1.msra.mxu0 0.0
    %269 = vmatprep.subr.mxu0 0.0
    %270 = vmatpush1.msra.mxu0 0.0
    %271 = vmatprep.subr.mxu0 0.0
    %272 = vmatpush1.msra.mxu0 0.0
    %273 = vmatprep.subr.mxu0 0.0
    %274 = vmatpush1.msra.mxu0 0.0
    %275 = vmatprep.subr.mxu0 0.0
    %276 = vmatpush1.msra.mxu0 0.0
    %277 = vmatprep.subr.mxu0 0.0
    %278 = vmatpush1.msra.mxu0 0.0
    %279 = vmatprep.subr.mxu0 0.0
    %280 = vmatpush1.msra.mxu0 0.0
    %281 = vmatprep.subr.mxu0 0.0
    %282 = vmatpush1.msra.mxu0 0.0
    %283 = vmatprep.subr.mxu0 0.0
    %284 = vmatpush1.msra.mxu0 0.0
    %285 = vmatprep.subr.mxu0 0.0
    %286 = vmatpush1.msra.mxu0 0.0
    %287 = vmatprep.subr.mxu0 0.0
    %288 = vmatpush1.msra.mxu0 0.0
    %289 = vmatprep.subr.mxu0 0.0
    %290 = vmatpush1.msra.mxu0 0.0
    %291 = vmatprep.subr.mxu0 0.0
    %292 = vmatpush1.msra.mxu0 0.0
    %293 = vmatprep.subr.mxu0 0.0
    %294 = vmatpush1.msra.mxu0 0.0
    %295 = vmatprep.subr.mxu0 0.0
    %296 = vmatpush1.msra.mxu0 0.0
    %297 = vmatprep.subr.mxu0 0.0
    %298 = vmatpush1.msra.mxu0 0.0
    %299 = vmatprep.subr.mxu0 0.0
    %300 = vmatpush1.msra.mxu0 0.0
    %301 = vmatprep.subr.mxu0 0.0
    %302 = vmatpush1.msra.mxu0 0.0
    %303 = vmatprep.subr.mxu0 0.0
    %304 = vmatpush1.msra.mxu0 0.0
    %305 = vmatprep.subr.mxu0 0.0
    %306 = vmatpush1.msra.mxu0 0.0
    %307 = vmatprep.subr.mxu0 0.0
    %308 = vmatpush1.msra.mxu0 0.0
    %309 = vmatprep.subr.mxu0 0.0
    %310 = vmatpush1.msra.mxu0 0.0
    %311 = vmatprep.subr.mxu0 0.0
    %312 = vmatpush1.msra.mxu0 0.0
    %313 = vmatprep.subr.mxu0 0.0
    %314 = vmatpush1.msra.mxu0 0.0
    %315 = vmatprep.subr.mxu0 0.0
    %316 = vmatpush1.msra.mxu0 0.0
    %317 = vmatprep.subr.mxu0 0.0
    %318 = vmatpush1.msra.mxu0 0.0
    %319 = vmatprep.subr.mxu0 0.0
    %320 = vmatpush1.msra.mxu0 0.0
    %321 = vmatprep.subr.mxu0 0.0
    %322 = vmatpush1.msra.mxu0 0.0
    %323 = vmatprep.subr.mxu0 0.0
    %324 = vmatpush1.msra.mxu0 0.0
    %325 = vmatprep.mubr.f32.mxu0 0.0
    %326 = vmatmul.mubr.f32.gmra.mrb[0].mxu0 %v256
    %v327 = vpop.f32.mrb[0].mxu0
    %v328 = vadd.f32 0.0, %v327
    %v329 = vpop.f32.mrb[0].mxu0
    %330 = vmatprep.mubr.f32.mxu0 0.0
    %331 = vmatmul.mubr.f32.gmra.mrb[0].mxu0 %v259
    %v332 = vpop.f32.mrb[0].mxu0
    %v333 = vadd.f32 0.0, %v332
    %v334 = vpop.f32.mrb[0].mxu0
    %335 = vdwg.mxu0
    %336 = vset.pattern.permute.xlu0 1
    %337 = vperm.xlu0 %336, %v128
    %v338 = vpop.permute.xlu0 %337
    %340 = vset.pattern.permute.xlu0 1
    %341 = vperm.xlu0 %340, %v134
    %v342 = vpop.permute.xlu0 %341
    %v344 = vlaneseq
    %v345 = vshrl.u32 %v344, 7
    %v346 = vsub.s32 1, %v345
    %v347 = vrot.slane %v206, %v346
    %v348 = vadd.f32 %v338, %v347
    %v349 = vadd.f32 %v342, %v347
    %vm350 = vcmp.gt.f32.partialorder %v348, 0.0
    %vm351 = vcmp.gt.f32.partialorder %v349, 0.0
    %v352 = vmul.f32 %v348, 0.2
    %v353 = vmul.f32 %v349, 0.2
    %v354 = vsel %vm350, %v348, %v352
    %v355 = vsel %vm351, %v349, %v353
    %v356 = vadd.f32 %v354, %v42
    %v357 = vadd.f32 %v355, %v43
    %v358 = vsel %vm52, %v356, -inf
    %359 = vmax.xlane.f32.xlu0 %v358
    %v360 = vpop.xlane.xlu0 %359
    %v361 = vsel %vm52, %v357, -inf
    %362 = vmax.xlane.f32.xlu0 %v361
    %v363 = vpop.xlane.xlu0 %362
    %v364 = vsub.f32 %v356, %v360
    %v365 = vsub.f32 %v357, %v363
    %v366 = vmul.f32 %v364, 1.442695
    %v367 = vpow.pop %v366
    %v368 = vmul.f32 %v365, 1.442695
    %v369 = vpow.pop %v368
    %v370 = vsel %vm52, %v367, 0.0
    %371 = vadd.xlane.f32.xlu0 %v370
    %v372 = vpop.xlane.xlu0 %371
    %v373 = vsel %vm52, %v369, 0.0
    %374 = vadd.xlane.f32.xlu0 %v373
    %v375 = vpop.xlane.xlu0 %374
    %v376 = vrcp.pop %v372
    %v377 = vmul.f32 %v367, %v376
    %v378 = vrcp.pop %v375
    %v379 = vmul.f32 %v369, %v378
    %382 = vrot.lane.b32.xlu0 %v126, 96
    %v383 = vpop.permute.xlu0 %382
    %384 = vrot.lane.b32.xlu0 %v132, 96
    %v385 = vpop.permute.xlu0 %384
    %v389 = vsel %vm52, %v377, 0
    %v392 = vsel %vm52, %v379, 0
    %394 = vmatprep.subr.mxu0 0.0
    %395 = vmatpush1.msra.mxu0 %v383
    %396 = vmatprep.subr.mxu0 0.0
    %397 = vmatpush1.msra.mxu0 %v385
    %398 = vmatprep.subr.mxu0 0.0
    %399 = vmatpush1.msra.mxu0 0.0
    %400 = vmatprep.subr.mxu0 0.0
    %401 = vmatpush1.msra.mxu0 0.0
    %402 = vmatprep.subr.mxu0 0.0
    %403 = vmatpush1.msra.mxu0 0.0
    %404 = vmatprep.subr.mxu0 0.0
    %405 = vmatpush1.msra.mxu0 0.0
    %406 = vmatprep.subr.mxu0 0.0
    %407 = vmatpush1.msra.mxu0 0.0
    %408 = vmatprep.subr.mxu0 0.0
    %409 = vmatpush1.msra.mxu0 0.0
    %410 = vmatprep.subr.mxu0 0.0
    %411 = vmatpush1.msra.mxu0 0.0
    %412 = vmatprep.subr.mxu0 0.0
    %413 = vmatpush1.msra.mxu0 0.0
    %414 = vmatprep.subr.mxu0 0.0
    %415 = vmatpush1.msra.mxu0 0.0
    %416 = vmatprep.subr.mxu0 0.0
    %417 = vmatpush1.msra.mxu0 0.0
    %418 = vmatprep.subr.mxu0 0.0
    %419 = vmatpush1.msra.mxu0 0.0
    %420 = vmatprep.subr.mxu0 0.0
    %421 = vmatpush1.msra.mxu0 0.0
    %422 = vmatprep.subr.mxu0 0.0
    %423 = vmatpush1.msra.mxu0 0.0
    %424 = vmatprep.subr.mxu0 0.0
    %425 = vmatpush1.msra.mxu0 0.0
    %426 = vmatprep.subr.mxu0 0.0
    %427 = vmatpush1.msra.mxu0 0.0
    %428 = vmatprep.subr.mxu0 0.0
    %429 = vmatpush1.msra.mxu0 0.0
    %430 = vmatprep.subr.mxu0 0.0
    %431 = vmatpush1.msra.mxu0 0.0
    %432 = vmatprep.subr.mxu0 0.0
    %433 = vmatpush1.msra.mxu0 0.0
    %434 = vmatprep.subr.mxu0 0.0
    %435 = vmatpush1.msra.mxu0 0.0
    %436 = vmatprep.subr.mxu0 0.0
    %437 = vmatpush1.msra.mxu0 0.0
    %438 = vmatprep.subr.mxu0 0.0
    %439 = vmatpush1.msra.mxu0 0.0
    %440 = vmatprep.subr.mxu0 0.0
    %441 = vmatpush1.msra.mxu0 0.0
    %442 = vmatprep.subr.mxu0 0.0
    %443 = vmatpush1.msra.mxu0 0.0
    %444 = vmatprep.subr.mxu0 0.0
    %445 = vmatpush1.msra.mxu0 0.0
    %446 = vmatprep.subr.mxu0 0.0
    %447 = vmatpush1.msra.mxu0 0.0
    %448 = vmatprep.subr.mxu0 0.0
    %449 = vmatpush1.msra.mxu0 0.0
    %450 = vmatprep.subr.mxu0 0.0
    %451 = vmatpush1.msra.mxu0 0.0
    %452 = vmatprep.subr.mxu0 0.0
    %453 = vmatpush1.msra.mxu0 0.0
    %454 = vmatprep.subr.mxu0 0.0
    %455 = vmatpush1.msra.mxu0 0.0
    %456 = vmatprep.subr.mxu0 0.0
    %457 = vmatpush1.msra.mxu0 0.0
    %458 = vmatprep.mubr.f32.mxu0 0.0
    %459 = vmatmul.mubr.f32.gmra.mrb[0].mxu0 %v389
    %v460 = vpop.f32.mrb[0].mxu0
    %v461 = vadd.f32 0.0, %v460
    %v462 = vpop.f32.mrb[0].mxu0
    %463 = vmatprep.mubr.f32.mxu0 0.0
    %464 = vmatmul.mubr.f32.gmra.mrb[0].mxu0 %v392
    %v465 = vpop.f32.mrb[0].mxu0
    %v466 = vadd.f32 0.0, %v465
    %v467 = vpop.f32.mrb[0].mxu0
    %468 = vdwg.mxu0
    %469 = vset.pattern.permute.xlu0 2
    %470 = vperm.xlu0 %469, %v128
    %v471 = vpop.permute.xlu0 %470
    %473 = vset.pattern.permute.xlu0 2
    %474 = vperm.xlu0 %473, %v134
    %v475 = vpop.permute.xlu0 %474
    %v477 = vlaneseq
    %v478 = vshrl.u32 %v477, 7
    %v479 = vsub.s32 2, %v478
    %v480 = vrot.slane %v206, %v479
    %v481 = vadd.f32 %v471, %v480
    %v482 = vadd.f32 %v475, %v480
    %vm483 = vcmp.gt.f32.partialorder %v481, 0.0
    %vm484 = vcmp.gt.f32.partialorder %v482, 0.0
    %v485 = vmul.f32 %v481, 0.2
    %v486 = vmul.f32 %v482, 0.2
    %v487 = vsel %vm483, %v481, %v485
    %v488 = vsel %vm484, %v482, %v486
    %v489 = vadd.f32 %v487, %v42
    %v490 = vadd.f32 %v488, %v43
    %v491 = vsel %vm52, %v489, -inf
    %492 = vmax.xlane.f32.xlu0 %v491
    %v493 = vpop.xlane.xlu0 %492
    %v494 = vsel %vm52, %v490, -inf
    %495 = vmax.xlane.f32.xlu0 %v494
    %v496 = vpop.xlane.xlu0 %495
    %v497 = vsub.f32 %v489, %v493
    %v498 = vsub.f32 %v490, %v496
    %v499 = vmul.f32 %v497, 1.442695
    %v500 = vpow.pop %v499
    %v501 = vmul.f32 %v498, 1.442695
    %v502 = vpow.pop %v501
    %v503 = vsel %vm52, %v500, 0.0
    %504 = vadd.xlane.f32.xlu0 %v503
    %v505 = vpop.xlane.xlu0 %504
    %v506 = vsel %vm52, %v502, 0.0
    %507 = vadd.xlane.f32.xlu0 %v506
    %v508 = vpop.xlane.xlu0 %507
    %v509 = vrcp.pop %v505
    %v510 = vmul.f32 %v500, %v509
    %v511 = vrcp.pop %v508
    %v512 = vmul.f32 %v502, %v511
    %513 = vrot.lane.b32.xlu0 %v126, 64
    %v514 = vpop.permute.xlu0 %513
    %515 = vrot.lane.b32.xlu0 %v132, 64
    %v516 = vpop.permute.xlu0 %515
    %v520 = vsel %vm52, %v510, 0
    %v523 = vsel %vm52, %v512, 0
    %525 = vmatprep.subr.mxu0 0.0
    %526 = vmatpush1.msra.mxu0 %v514
    %527 = vmatprep.subr.mxu0 0.0
    %528 = vmatpush1.msra.mxu0 %v516
    %529 = vmatprep.subr.mxu0 0.0
    %530 = vmatpush1.msra.mxu0 0.0
    %531 = vmatprep.subr.mxu0 0.0
    %532 = vmatpush1.msra.mxu0 0.0
    %533 = vmatprep.subr.mxu0 0.0
    %534 = vmatpush1.msra.mxu0 0.0
    %535 = vmatprep.subr.mxu0 0.0
    %536 = vmatpush1.msra.mxu0 0.0
    %537 = vmatprep.subr.mxu0 0.0
    %538 = vmatpush1.msra.mxu0 0.0
    %539 = vmatprep.subr.mxu0 0.0
    %540 = vmatpush1.msra.mxu0 0.0
    %541 = vmatprep.subr.mxu0 0.0
    %542 = vmatpush1.msra.mxu0 0.0
    %543 = vmatprep.subr.mxu0 0.0
    %544 = vmatpush1.msra.mxu0 0.0
    %545 = vmatprep.subr.mxu0 0.0
    %546 = vmatpush1.msra.mxu0 0.0
    %547 = vmatprep.subr.mxu0 0.0
    %548 = vmatpush1.msra.mxu0 0.0
    %549 = vmatprep.subr.mxu0 0.0
    %550 = vmatpush1.msra.mxu0 0.0
    %551 = vmatprep.subr.mxu0 0.0
    %552 = vmatpush1.msra.mxu0 0.0
    %553 = vmatprep.subr.mxu0 0.0
    %554 = vmatpush1.msra.mxu0 0.0
    %555 = vmatprep.subr.mxu0 0.0
    %556 = vmatpush1.msra.mxu0 0.0
    %557 = vmatprep.subr.mxu0 0.0
    %558 = vmatpush1.msra.mxu0 0.0
    %559 = vmatprep.subr.mxu0 0.0
    %560 = vmatpush1.msra.mxu0 0.0
    %561 = vmatprep.subr.mxu0 0.0
    %562 = vmatpush1.msra.mxu0 0.0
    %563 = vmatprep.subr.mxu0 0.0
    %564 = vmatpush1.msra.mxu0 0.0
    %565 = vmatprep.subr.mxu0 0.0
    %566 = vmatpush1.msra.mxu0 0.0
    %567 = vmatprep.subr.mxu0 0.0
    %568 = vmatpush1.msra.mxu0 0.0
    %569 = vmatprep.subr.mxu0 0.0
    %570 = vmatpush1.msra.mxu0 0.0
    %571 = vmatprep.subr.mxu0 0.0
    %572 = vmatpush1.msra.mxu0 0.0
    %573 = vmatprep.subr.mxu0 0.0
    %574 = vmatpush1.msra.mxu0 0.0
    %575 = vmatprep.subr.mxu0 0.0
    %576 = vmatpush1.msra.mxu0 0.0
    %577 = vmatprep.subr.mxu0 0.0
    %578 = vmatpush1.msra.mxu0 0.0
    %579 = vmatprep.subr.mxu0 0.0
    %580 = vmatpush1.msra.mxu0 0.0
    %581 = vmatprep.subr.mxu0 0.0
    %582 = vmatpush1.msra.mxu0 0.0
    %583 = vmatprep.subr.mxu0 0.0
    %584 = vmatpush1.msra.mxu0 0.0
    %585 = vmatprep.subr.mxu0 0.0
    %586 = vmatpush1.msra.mxu0 0.0
    %587 = vmatprep.subr.mxu0 0.0
    %588 = vmatpush1.msra.mxu0 0.0
    %589 = vmatprep.mubr.f32.mxu0 0.0
    %590 = vmatmul.mubr.f32.gmra.mrb[0].mxu0 %v520
    %v591 = vpop.f32.mrb[0].mxu0
    %v592 = vadd.f32 0.0, %v591
    %v593 = vpop.f32.mrb[0].mxu0
    %594 = vmatprep.mubr.f32.mxu0 0.0
    %595 = vmatmul.mubr.f32.gmra.mrb[0].mxu0 %v523
    %v596 = vpop.f32.mrb[0].mxu0
    %v597 = vadd.f32 0.0, %v596
    %v598 = vpop.f32.mrb[0].mxu0
    %599 = vdwg.mxu0
    %600 = vset.pattern.permute.xlu0 3
    %601 = vperm.xlu0 %600, %v128
    %v602 = vpop.permute.xlu0 %601
    %604 = vset.pattern.permute.xlu0 3
    %605 = vperm.xlu0 %604, %v134
    %v606 = vpop.permute.xlu0 %605
    %v608 = vlaneseq
    %v609 = vshrl.u32 %v608, 7
    %v610 = vsub.s32 3, %v609
    %v611 = vrot.slane %v206, %v610
    %v612 = vadd.f32 %v602, %v611
    %v613 = vadd.f32 %v606, %v611
    %vm614 = vcmp.gt.f32.partialorder %v612, 0.0
    %vm615 = vcmp.gt.f32.partialorder %v613, 0.0
    %v616 = vmul.f32 %v612, 0.2
    %v617 = vmul.f32 %v613, 0.2
    %v618 = vsel %vm614, %v612, %v616
    %v619 = vsel %vm615, %v613, %v617
    %v620 = vadd.f32 %v618, %v42
    %v621 = vadd.f32 %v619, %v43
    %v622 = vsel %vm52, %v620, -inf
    %623 = vmax.xlane.f32.xlu0 %v622
    %v624 = vpop.xlane.xlu0 %623
    %v625 = vsel %vm52, %v621, -inf
    %626 = vmax.xlane.f32.xlu0 %v625
    %v627 = vpop.xlane.xlu0 %626
    %v628 = vsub.f32 %v620, %v624
    %v629 = vsub.f32 %v621, %v627
    %v630 = vmul.f32 %v628, 1.442695
    %v631 = vpow.pop %v630
    %v632 = vmul.f32 %v629, 1.442695
    %v633 = vpow.pop %v632
    %v634 = vsel %vm52, %v631, 0.0
    %635 = vadd.xlane.f32.xlu0 %v634
    %v636 = vpop.xlane.xlu0 %635
    %v637 = vsel %vm52, %v633, 0.0
    %638 = vadd.xlane.f32.xlu0 %v637
    %v639 = vpop.xlane.xlu0 %638
    %v640 = vrcp.pop %v636
    %v641 = vmul.f32 %v631, %v640
    %v642 = vrcp.pop %v639
    %v643 = vmul.f32 %v633, %v642
    %644 = vrot.lane.b32.xlu0 %v126, 32
    %v645 = vpop.permute.xlu0 %644
    %646 = vrot.lane.b32.xlu0 %v132, 32
    %v647 = vpop.permute.xlu0 %646
    %v651 = vsel %vm52, %v641, 0
    %v654 = vsel %vm52, %v643, 0
    %656 = vmatprep.subr.mxu0 0.0
    %657 = vmatpush1.msra.mxu0 %v645
    %658 = vmatprep.subr.mxu0 0.0
    %659 = vmatpush1.msra.mxu0 %v647
    %660 = vmatprep.subr.mxu0 0.0
    %661 = vmatpush1.msra.mxu0 0.0
    %662 = vmatprep.subr.mxu0 0.0
    %663 = vmatpush1.msra.mxu0 0.0
    %664 = vmatprep.subr.mxu0 0.0
    %665 = vmatpush1.msra.mxu0 0.0
    %666 = vmatprep.subr.mxu0 0.0
    %667 = vmatpush1.msra.mxu0 0.0
    %668 = vmatprep.subr.mxu0 0.0
    %669 = vmatpush1.msra.mxu0 0.0
    %670 = vmatprep.subr.mxu0 0.0
    %671 = vmatpush1.msra.mxu0 0.0
    %672 = vmatprep.subr.mxu0 0.0
    %673 = vmatpush1.msra.mxu0 0.0
    %674 = vmatprep.subr.mxu0 0.0
    %675 = vmatpush1.msra.mxu0 0.0
    %676 = vmatprep.subr.mxu0 0.0
    %677 = vmatpush1.msra.mxu0 0.0
    %678 = vmatprep.subr.mxu0 0.0
    %679 = vmatpush1.msra.mxu0 0.0
    %680 = vmatprep.subr.mxu0 0.0
    %681 = vmatpush1.msra.mxu0 0.0
    %682 = vmatprep.subr.mxu0 0.0
    %683 = vmatpush1.msra.mxu0 0.0
    %684 = vmatprep.subr.mxu0 0.0
    %685 = vmatpush1.msra.mxu0 0.0
    %686 = vmatprep.subr.mxu0 0.0
    %687 = vmatpush1.msra.mxu0 0.0
    %688 = vmatprep.subr.mxu0 0.0
    %689 = vmatpush1.msra.mxu0 0.0
    %690 = vmatprep.subr.mxu0 0.0
    %691 = vmatpush1.msra.mxu0 0.0
    %692 = vmatprep.subr.mxu0 0.0
    %693 = vmatpush1.msra.mxu0 0.0
    %694 = vmatprep.subr.mxu0 0.0
    %695 = vmatpush1.msra.mxu0 0.0
    %696 = vmatprep.subr.mxu0 0.0
    %697 = vmatpush1.msra.mxu0 0.0
    %698 = vmatprep.subr.mxu0 0.0
    %699 = vmatpush1.msra.mxu0 0.0
    %700 = vmatprep.subr.mxu0 0.0
    %701 = vmatpush1.msra.mxu0 0.0
    %702 = vmatprep.subr.mxu0 0.0
    %703 = vmatpush1.msra.mxu0 0.0
    %704 = vmatprep.subr.mxu0 0.0
    %705 = vmatpush1.msra.mxu0 0.0
    %706 = vmatprep.subr.mxu0 0.0
    %707 = vmatpush1.msra.mxu0 0.0
    %708 = vmatprep.subr.mxu0 0.0
    %709 = vmatpush1.msra.mxu0 0.0
    %710 = vmatprep.subr.mxu0 0.0
    %711 = vmatpush1.msra.mxu0 0.0
    %712 = vmatprep.subr.mxu0 0.0
    %713 = vmatpush1.msra.mxu0 0.0
    %714 = vmatprep.subr.mxu0 0.0
    %715 = vmatpush1.msra.mxu0 0.0
    %716 = vmatprep.subr.mxu0 0.0
    %717 = vmatpush1.msra.mxu0 0.0
    %718 = vmatprep.subr.mxu0 0.0
    %719 = vmatpush1.msra.mxu0 0.0
    %720 = vmatprep.mubr.f32.mxu0 0.0
    %721 = vmatmul.mubr.f32.gmra.mrb[0].mxu0 %v651
    %v722 = vpop.f32.mrb[0].mxu0
    %v723 = vadd.f32 0.0, %v722
    %v724 = vpop.f32.mrb[0].mxu0
    %725 = vmatprep.mubr.f32.mxu0 0.0
    %726 = vmatmul.mubr.f32.gmra.mrb[0].mxu0 %v654
    %v727 = vpop.f32.mrb[0].mxu0
    %v728 = vadd.f32 0.0, %v727
    %v729 = vpop.f32.mrb[0].mxu0
    %730 = vdwg.mxu0
    %733 = vrot.lane.b32.xlu0 %v461, 32
    %v734 = vpop.permute.xlu0 %733
    %735 = vrot.lane.b32.xlu0 %v466, 32
    %v736 = vpop.permute.xlu0 %735
    %741 = vrot.lane.b32.xlu0 %v592, 64
    %v742 = vpop.permute.xlu0 %741
    %743 = vrot.lane.b32.xlu0 %v597, 64
    %v744 = vpop.permute.xlu0 %743
    %749 = vrot.lane.b32.xlu0 %v723, 96
    %v750 = vpop.permute.xlu0 %749
    %751 = vrot.lane.b32.xlu0 %v728, 96
    %v752 = vpop.permute.xlu0 %751
    %vm755 = vcmask 261120
    %v756 = vsel %vm755, %v328, %v734
    %v757 = vsel %vm755, %v333, %v736
    %vm758 = vcmask 523264
    %v759 = vsel %vm758, %v756, %v742
    %v760 = vsel %vm758, %v757, %v744
    %vm761 = vcmask 785408
    %v762 = vsel %vm761, %v759, %v750
    %v763 = vsel %vm761, %v760, %v752
    %v765 = vlaneseq
    %v766 = vshrl.u32 %v765, 7
    %v767 = vsub.s32 0, %v766
    %v768 = vrot.slane %v51, %v767
    %v770 = vadd.f32 %v762, %v768
    %v771 = vadd.f32 %v763, %v768
    %vm772 = vcmp.gt.f32.partialorder %v770, 0.0
    %vm773 = vcmp.gt.f32.partialorder %v771, 0.0
    %v774 = vmul.f32 %v770, 1.442695
    %v775 = vpow.pop %v774
    %v776 = vmul.f32 %v771, 1.442695
    %v777 = vpow.pop %v776
    %v778 = vsub.f32 %v775, 1.0
    %v779 = vsub.f32 %v777, 1.0
    %v780 = vsel %vm772, %v770, %v778
    %v781 = vsel %vm773, %v771, %v779
    %v782 = vld [vmem:[%s5] sm:$0xff]
    %v783 = vld [vmem:[%s5 + $0x8] sm:$0xff]
    %v784 = vld [vmem:[%s5 + $0x10] sm:$0xff]
    %v785 = vld [vmem:[%s5 + $0x18] sm:$0xff]
    %v786 = vld [vmem:[%s5 + $0x20] sm:$0xff]
    %v787 = vld [vmem:[%s5 + $0x28] sm:$0xff]
    %v788 = vld [vmem:[%s5 + $0x30] sm:$0xff]
    %v789 = vld [vmem:[%s5 + $0x38] sm:$0xff]
    %v790 = vld [vmem:[%s5 + $0x40] sm:$0xff]
    %v791 = vld [vmem:[%s5 + $0x48] sm:$0xff]
    %v792 = vld [vmem:[%s5 + $0x50] sm:$0xff]
    %v793 = vld [vmem:[%s5 + $0x58] sm:$0xff]
    %v794 = vld [vmem:[%s5 + $0x60] sm:$0xff]
    %v795 = vld [vmem:[%s5 + $0x68] sm:$0xff]
    %v796 = vld [vmem:[%s5 + $0x70] sm:$0xff]
    %v797 = vld [vmem:[%s5 + $0x78] sm:$0xff]
    %v798 = vld [vmem:[%s5 + $0x80] sm:$0xff]
    %v799 = vld [vmem:[%s5 + $0x88] sm:$0xff]
    %v800 = vld [vmem:[%s5 + $0x90] sm:$0xff]
    %v801 = vld [vmem:[%s5 + $0x98] sm:$0xff]
    %v802 = vld [vmem:[%s5 + $0xa0] sm:$0xff]
    %v803 = vld [vmem:[%s5 + $0xa8] sm:$0xff]
    %v804 = vld [vmem:[%s5 + $0xb0] sm:$0xff]
    %v805 = vld [vmem:[%s5 + $0xb8] sm:$0xff]
    %v806 = vld [vmem:[%s5 + $0xc0] sm:$0xff]
    %v807 = vld [vmem:[%s5 + $0xc8] sm:$0xff]
    %v808 = vld [vmem:[%s5 + $0xd0] sm:$0xff]
    %v809 = vld [vmem:[%s5 + $0xd8] sm:$0xff]
    %v810 = vld [vmem:[%s5 + $0xe0] sm:$0xff]
    %v811 = vld [vmem:[%s5 + $0xe8] sm:$0xff]
    %v812 = vld [vmem:[%s5 + $0xf0] sm:$0xff]
    %v813 = vld [vmem:[%s5 + $0xf8] sm:$0xff]
    %v814 = vld [vmem:[%s6] sm:$0xf]
    %v815 = vld [vmem:[%s7] sm:$0x1]
    %816 = vmatprep.subr.mxu0 %v783
    %817 = vmatpush1.msra.mxu0 %v782
    %818 = vmatprep.subr.mxu0 %v785
    %819 = vmatpush1.msra.mxu0 %v784
    %820 = vmatprep.subr.mxu0 %v787
    %821 = vmatpush1.msra.mxu0 %v786
    %822 = vmatprep.subr.mxu0 %v789
    %823 = vmatpush1.msra.mxu0 %v788
    %824 = vmatprep.subr.mxu0 %v791
    %825 = vmatpush1.msra.mxu0 %v790
    %826 = vmatprep.subr.mxu0 %v793
    %827 = vmatpush1.msra.mxu0 %v792
    %828 = vmatprep.subr.mxu0 %v795
    %829 = vmatpush1.msra.mxu0 %v794
    %830 = vmatprep.subr.mxu0 %v797
    %831 = vmatpush1.msra.mxu0 %v796
    %832 = vmatprep.subr.mxu0 %v799
    %833 = vmatpush1.msra.mxu0 %v798
    %834 = vmatprep.subr.mxu0 %v801
    %835 = vmatpush1.msra.mxu0 %v800
    %836 = vmatprep.subr.mxu0 %v803
    %837 = vmatpush1.msra.mxu0 %v802
    %838 = vmatprep.subr.mxu0 %v805
    %839 = vmatpush1.msra.mxu0 %v804
    %840 = vmatprep.subr.mxu0 %v807
    %841 = vmatpush1.msra.mxu0 %v806
    %842 = vmatprep.subr.mxu0 %v809
    %843 = vmatpush1.msra.mxu0 %v808
    %844 = vmatprep.subr.mxu0 %v811
    %845 = vmatpush1.msra.mxu0 %v810
    %846 = vmatprep.subr.mxu0 %v813
    %847 = vmatpush1.msra.mxu0 %v812
    %848 = vmatprep.subr.mxu0 0.0
    %849 = vmatpush1.msra.mxu0 0.0
    %850 = vmatprep.subr.mxu0 0.0
    %851 = vmatpush1.msra.mxu0 0.0
    %852 = vmatprep.subr.mxu0 0.0
    %853 = vmatpush1.msra.mxu0 0.0
    %854 = vmatprep.subr.mxu0 0.0
    %855 = vmatpush1.msra.mxu0 0.0
    %856 = vmatprep.subr.mxu0 0.0
    %857 = vmatpush1.msra.mxu0 0.0
    %858 = vmatprep.subr.mxu0 0.0
    %859 = vmatpush1.msra.mxu0 0.0
    %860 = vmatprep.subr.mxu0 0.0
    %861 = vmatpush1.msra.mxu0 0.0
    %862 = vmatprep.subr.mxu0 0.0
    %863 = vmatpush1.msra.mxu0 0.0
    %864 = vmatprep.subr.mxu0 0.0
    %865 = vmatpush1.msra.mxu0 0.0
    %866 = vmatprep.subr.mxu0 0.0
    %867 = vmatpush1.msra.mxu0 0.0
    %868 = vmatprep.subr.mxu0 0.0
    %869 = vmatpush1.msra.mxu0 0.0
    %870 = vmatprep.subr.mxu0 0.0
    %871 = vmatpush1.msra.mxu0 0.0
    %872 = vmatprep.subr.mxu0 0.0
    %873 = vmatpush1.msra.mxu0 0.0
    %874 = vmatprep.subr.mxu0 0.0
    %875 = vmatpush1.msra.mxu0 0.0
    %876 = vmatprep.subr.mxu0 0.0
    %877 = vmatpush1.msra.mxu0 0.0
    %878 = vmatprep.subr.mxu0 0.0
    %879 = vmatpush1.msra.mxu0 0.0
    %880 = vmatprep.mubr.f32.mxu0 0.0
    %881 = vmatmul.mubr.f32.gmra.mrb[0].mxu0 %v780
    %v882 = vpop.f32.mrb[0].mxu0
    %v883 = vadd.f32 0.0, %v882
    %v884 = vpop.f32.mrb[0].mxu0
    %v885 = vadd.f32 0.0, %v884
    %886 = vmatprep.mubr.f32.mxu0 0.0
    %887 = vmatmul.mubr.f32.gmra.mrb[0].mxu0 %v781
    %v888 = vpop.f32.mrb[0].mxu0
    %v889 = vadd.f32 0.0, %v888
    %v890 = vpop.f32.mrb[0].mxu0
    %v891 = vadd.f32 0.0, %v890
    %892 = vdwg.mxu0
    %893 = vmatprep.subr.mxu0 0.0
    %894 = vmatpush1.xpose.msra.mxu0 %v780
    %895 = vmatprep.subr.mxu0 0.0
    %896 = vmatpush1.xpose.msra.mxu0 %v781
    %897 = vmatprep.subr.mxu0 0.0
    %898 = vmatpush1.xpose.msra.mxu0 0.0
    %899 = vmatprep.subr.mxu0 0.0
    %900 = vmatpush1.xpose.msra.mxu0 0.0
    %901 = vmatprep.subr.mxu0 0.0
    %902 = vmatpush1.xpose.msra.mxu0 0.0
    %903 = vmatprep.subr.mxu0 0.0
    %904 = vmatpush1.xpose.msra.mxu0 0.0
    %905 = vmatprep.subr.mxu0 0.0
    %906 = vmatpush1.xpose.msra.mxu0 0.0
    %907 = vmatprep.subr.mxu0 0.0
    %908 = vmatpush1.xpose.msra.mxu0 0.0
    %909 = vmatprep.subr.mxu0 0.0
    %910 = vmatpush1.xpose.msra.mxu0 0.0
    %911 = vmatprep.subr.mxu0 0.0
    %912 = vmatpush1.xpose.msra.mxu0 0.0
    %913 = vmatprep.subr.mxu0 0.0
    %914 = vmatpush1.xpose.msra.mxu0 0.0
    %915 = vmatprep.subr.mxu0 0.0
    %916 = vmatpush1.xpose.msra.mxu0 0.0
    %917 = vmatprep.subr.mxu0 0.0
    %918 = vmatpush1.xpose.msra.mxu0 0.0
    %919 = vmatprep.subr.mxu0 0.0
    %920 = vmatpush1.xpose.msra.mxu0 0.0
    %921 = vmatprep.subr.mxu0 0.0
    %922 = vmatpush1.xpose.msra.mxu0 0.0
    %923 = vmatprep.subr.mxu0 0.0
    %924 = vmatpush1.xpose.msra.mxu0 0.0
    %925 = vmatprep.subr.mxu0 0.0
    %926 = vmatpush1.xpose.msra.mxu0 0.0
    %927 = vmatprep.subr.mxu0 0.0
    %928 = vmatpush1.xpose.msra.mxu0 0.0
    %929 = vmatprep.subr.mxu0 0.0
    %930 = vmatpush1.xpose.msra.mxu0 0.0
    %931 = vmatprep.subr.mxu0 0.0
    %932 = vmatpush1.xpose.msra.mxu0 0.0
    %933 = vmatprep.subr.mxu0 0.0
    %934 = vmatpush1.xpose.msra.mxu0 0.0
    %935 = vmatprep.subr.mxu0 0.0
    %936 = vmatpush1.xpose.msra.mxu0 0.0
    %937 = vmatprep.subr.mxu0 0.0
    %938 = vmatpush1.xpose.msra.mxu0 0.0
    %939 = vmatprep.subr.mxu0 0.0
    %940 = vmatpush1.xpose.msra.mxu0 0.0
    %941 = vmatprep.subr.mxu0 0.0
    %942 = vmatpush1.xpose.msra.mxu0 0.0
    %943 = vmatprep.subr.mxu0 0.0
    %944 = vmatpush1.xpose.msra.mxu0 0.0
    %945 = vmatprep.subr.mxu0 0.0
    %946 = vmatpush1.xpose.msra.mxu0 0.0
    %947 = vmatprep.subr.mxu0 0.0
    %948 = vmatpush1.xpose.msra.mxu0 0.0
    %949 = vmatprep.subr.mxu0 0.0
    %950 = vmatpush1.xpose.msra.mxu0 0.0
    %951 = vmatprep.subr.mxu0 0.0
    %952 = vmatpush1.xpose.msra.mxu0 0.0
    %953 = vmatprep.subr.mxu0 0.0
    %954 = vmatpush1.xpose.msra.mxu0 0.0
    %955 = vmatprep.subr.mxu0 0.0
    %956 = vmatpush1.xpose.msra.mxu0 0.0
    %957 = vmatprep.mubr.f32.mxu0 0.0
    %958 = vmatmul.mubr.f32.gmra.mrb[0].mxu0 %v814
    %v959 = vpop.f32.mrb[0].mxu0
    %v960 = vadd.f32 0.0, %v959
    %v961 = vpop.f32.mrb[0].mxu0
    %962 = vdwg.mxu0
    %964 = vset.pattern.permute.xlu0 0
    %965 = vperm.xlu0 %964, %v885
    %v966 = vpop.permute.xlu0 %965
    %969 = vset.pattern.permute.xlu0 0
    %970 = vperm.xlu0 %969, %v891
    %v971 = vpop.permute.xlu0 %970
    %v973 = vlaneseq
    %v974 = vshrl.u32 %v973, 7
    %v975 = vsub.s32 0, %v974
    %v976 = vrot.slane %v960, %v975
    %v977 = vadd.f32 %v966, %v976
    %v978 = vadd.f32 %v971, %v976
    %vm979 = vcmp.gt.f32.partialorder %v977, 0.0
    %vm980 = vcmp.gt.f32.partialorder %v978, 0.0
    %v981 = vmul.f32 %v977, 0.2
    %v982 = vmul.f32 %v978, 0.2
    %v983 = vsel %vm979, %v977, %v981
    %v984 = vsel %vm980, %v978, %v982
    %v985 = vadd.f32 %v983, %v42
    %v986 = vadd.f32 %v984, %v43
    %v987 = vsel %vm52, %v985, -inf
    %988 = vmax.xlane.f32.xlu0 %v987
    %v989 = vpop.xlane.xlu0 %988
    %v990 = vsel %vm52, %v986, -inf
    %991 = vmax.xlane.f32.xlu0 %v990
    %v992 = vpop.xlane.xlu0 %991
    %v993 = vsub.f32 %v985, %v989
    %v994 = vsub.f32 %v986, %v992
    %v995 = vmul.f32 %v993, 1.442695
    %v996 = vpow.pop %v995
    %v997 = vmul.f32 %v994, 1.442695
    %v998 = vpow.pop %v997
    %v999 = vsel %vm52, %v996, 0.0
    %1000 = vadd.xlane.f32.xlu0 %v999
    %v1001 = vpop.xlane.xlu0 %1000
    %v1002 = vsel %vm52, %v998, 0.0
    %1003 = vadd.xlane.f32.xlu0 %v1002
    %v1004 = vpop.xlane.xlu0 %1003
    %v1005 = vrcp.pop %v1001
    %v1006 = vmul.f32 %v996, %v1005
    %v1007 = vrcp.pop %v1004
    %v1008 = vmul.f32 %v998, %v1007
    %v1010 = vsel %vm52, %v1006, 0
    %v1013 = vsel %vm52, %v1008, 0
    %1015 = vmatprep.subr.mxu0 0.0
    %1016 = vmatpush1.msra.mxu0 %v883
    %1017 = vmatprep.subr.mxu0 0.0
    %1018 = vmatpush1.msra.mxu0 %v889
    %1019 = vmatprep.subr.mxu0 0.0
    %1020 = vmatpush1.msra.mxu0 0.0
    %1021 = vmatprep.subr.mxu0 0.0
    %1022 = vmatpush1.msra.mxu0 0.0
    %1023 = vmatprep.subr.mxu0 0.0
    %1024 = vmatpush1.msra.mxu0 0.0
    %1025 = vmatprep.subr.mxu0 0.0
    %1026 = vmatpush1.msra.mxu0 0.0
    %1027 = vmatprep.subr.mxu0 0.0
    %1028 = vmatpush1.msra.mxu0 0.0
    %1029 = vmatprep.subr.mxu0 0.0
    %1030 = vmatpush1.msra.mxu0 0.0
    %1031 = vmatprep.subr.mxu0 0.0
    %1032 = vmatpush1.msra.mxu0 0.0
    %1033 = vmatprep.subr.mxu0 0.0
    %1034 = vmatpush1.msra.mxu0 0.0
    %1035 = vmatprep.subr.mxu0 0.0
    %1036 = vmatpush1.msra.mxu0 0.0
    %1037 = vmatprep.subr.mxu0 0.0
    %1038 = vmatpush1.msra.mxu0 0.0
    %1039 = vmatprep.subr.mxu0 0.0
    %1040 = vmatpush1.msra.mxu0 0.0
    %1041 = vmatprep.subr.mxu0 0.0
    %1042 = vmatpush1.msra.mxu0 0.0
    %1043 = vmatprep.subr.mxu0 0.0
    %1044 = vmatpush1.msra.mxu0 0.0
    %1045 = vmatprep.subr.mxu0 0.0
    %1046 = vmatpush1.msra.mxu0 0.0
    %1047 = vmatprep.subr.mxu0 0.0
    %1048 = vmatpush1.msra.mxu0 0.0
    %1049 = vmatprep.subr.mxu0 0.0
    %1050 = vmatpush1.msra.mxu0 0.0
    %1051 = vmatprep.subr.mxu0 0.0
    %1052 = vmatpush1.msra.mxu0 0.0
    %1053 = vmatprep.subr.mxu0 0.0
    %1054 = vmatpush1.msra.mxu0 0.0
    %1055 = vmatprep.subr.mxu0 0.0
    %1056 = vmatpush1.msra.mxu0 0.0
    %1057 = vmatprep.subr.mxu0 0.0
    %1058 = vmatpush1.msra.mxu0 0.0
    %1059 = vmatprep.subr.mxu0 0.0
    %1060 = vmatpush1.msra.mxu0 0.0
    %1061 = vmatprep.subr.mxu0 0.0
    %1062 = vmatpush1.msra.mxu0 0.0
    %1063 = vmatprep.subr.mxu0 0.0
    %1064 = vmatpush1.msra.mxu0 0.0
    %1065 = vmatprep.subr.mxu0 0.0
    %1066 = vmatpush1.msra.mxu0 0.0
    %1067 = vmatprep.subr.mxu0 0.0
    %1068 = vmatpush1.msra.mxu0 0.0
    %1069 = vmatprep.subr.mxu0 0.0
    %1070 = vmatpush1.msra.mxu0 0.0
    %1071 = vmatprep.subr.mxu0 0.0
    %1072 = vmatpush1.msra.mxu0 0.0
    %1073 = vmatprep.subr.mxu0 0.0
    %1074 = vmatpush1.msra.mxu0 0.0
    %1075 = vmatprep.subr.mxu0 0.0
    %1076 = vmatpush1.msra.mxu0 0.0
    %1077 = vmatprep.subr.mxu0 0.0
    %1078 = vmatpush1.msra.mxu0 0.0
    %1079 = vmatprep.mubr.f32.mxu0 0.0
    %1080 = vmatmul.mubr.f32.gmra.mrb[0].mxu0 %v1010
    %v1081 = vpop.f32.mrb[0].mxu0
    %v1082 = vadd.f32 0.0, %v1081
    %v1083 = vpop.f32.mrb[0].mxu0
    %1084 = vmatprep.mubr.f32.mxu0 0.0
    %1085 = vmatmul.mubr.f32.gmra.mrb[0].mxu0 %v1013
    %v1086 = vpop.f32.mrb[0].mxu0
    %v1087 = vadd.f32 0.0, %v1086
    %v1088 = vpop.f32.mrb[0].mxu0
    %1089 = vdwg.mxu0
    %1090 = vset.pattern.permute.xlu0 1
    %1091 = vperm.xlu0 %1090, %v885
    %v1092 = vpop.permute.xlu0 %1091
    %1094 = vset.pattern.permute.xlu0 1
    %1095 = vperm.xlu0 %1094, %v891
    %v1096 = vpop.permute.xlu0 %1095
    %v1098 = vlaneseq
    %v1099 = vshrl.u32 %v1098, 7
    %v1100 = vsub.s32 1, %v1099
    %v1101 = vrot.slane %v960, %v1100
    %v1102 = vadd.f32 %v1092, %v1101
    %v1103 = vadd.f32 %v1096, %v1101
    %vm1104 = vcmp.gt.f32.partialorder %v1102, 0.0
    %vm1105 = vcmp.gt.f32.partialorder %v1103, 0.0
    %v1106 = vmul.f32 %v1102, 0.2
    %v1107 = vmul.f32 %v1103, 0.2
    %v1108 = vsel %vm1104, %v1102, %v1106
    %v1109 = vsel %vm1105, %v1103, %v1107
    %v1110 = vadd.f32 %v1108, %v42
    %v1111 = vadd.f32 %v1109, %v43
    %v1112 = vsel %vm52, %v1110, -inf
    %1113 = vmax.xlane.f32.xlu0 %v1112
    %v1114 = vpop.xlane.xlu0 %1113
    %v1115 = vsel %vm52, %v1111, -inf
    %1116 = vmax.xlane.f32.xlu0 %v1115
    %v1117 = vpop.xlane.xlu0 %1116
    %v1118 = vsub.f32 %v1110, %v1114
    %v1119 = vsub.f32 %v1111, %v1117
    %v1120 = vmul.f32 %v1118, 1.442695
    %v1121 = vpow.pop %v1120
    %v1122 = vmul.f32 %v1119, 1.442695
    %v1123 = vpow.pop %v1122
    %v1124 = vsel %vm52, %v1121, 0.0
    %1125 = vadd.xlane.f32.xlu0 %v1124
    %v1126 = vpop.xlane.xlu0 %1125
    %v1127 = vsel %vm52, %v1123, 0.0
    %1128 = vadd.xlane.f32.xlu0 %v1127
    %v1129 = vpop.xlane.xlu0 %1128
    %v1130 = vrcp.pop %v1126
    %v1131 = vmul.f32 %v1121, %v1130
    %v1132 = vrcp.pop %v1129
    %v1133 = vmul.f32 %v1123, %v1132
    %1136 = vrot.lane.b32.xlu0 %v883, 96
    %v1137 = vpop.permute.xlu0 %1136
    %1138 = vrot.lane.b32.xlu0 %v889, 96
    %v1139 = vpop.permute.xlu0 %1138
    %v1143 = vsel %vm52, %v1131, 0
    %v1146 = vsel %vm52, %v1133, 0
    %1148 = vmatprep.subr.mxu0 0.0
    %1149 = vmatpush1.msra.mxu0 %v1137
    %1150 = vmatprep.subr.mxu0 0.0
    %1151 = vmatpush1.msra.mxu0 %v1139
    %1152 = vmatprep.subr.mxu0 0.0
    %1153 = vmatpush1.msra.mxu0 0.0
    %1154 = vmatprep.subr.mxu0 0.0
    %1155 = vmatpush1.msra.mxu0 0.0
    %1156 = vmatprep.subr.mxu0 0.0
    %1157 = vmatpush1.msra.mxu0 0.0
    %1158 = vmatprep.subr.mxu0 0.0
    %1159 = vmatpush1.msra.mxu0 0.0
    %1160 = vmatprep.subr.mxu0 0.0
    %1161 = vmatpush1.msra.mxu0 0.0
    %1162 = vmatprep.subr.mxu0 0.0
    %1163 = vmatpush1.msra.mxu0 0.0
    %1164 = vmatprep.subr.mxu0 0.0
    %1165 = vmatpush1.msra.mxu0 0.0
    %1166 = vmatprep.subr.mxu0 0.0
    %1167 = vmatpush1.msra.mxu0 0.0
    %1168 = vmatprep.subr.mxu0 0.0
    %1169 = vmatpush1.msra.mxu0 0.0
    %1170 = vmatprep.subr.mxu0 0.0
    %1171 = vmatpush1.msra.mxu0 0.0
    %1172 = vmatprep.subr.mxu0 0.0
    %1173 = vmatpush1.msra.mxu0 0.0
    %1174 = vmatprep.subr.mxu0 0.0
    %1175 = vmatpush1.msra.mxu0 0.0
    %1176 = vmatprep.subr.mxu0 0.0
    %1177 = vmatpush1.msra.mxu0 0.0
    %1178 = vmatprep.subr.mxu0 0.0
    %1179 = vmatpush1.msra.mxu0 0.0
    %1180 = vmatprep.subr.mxu0 0.0
    %1181 = vmatpush1.msra.mxu0 0.0
    %1182 = vmatprep.subr.mxu0 0.0
    %1183 = vmatpush1.msra.mxu0 0.0
    %1184 = vmatprep.subr.mxu0 0.0
    %1185 = vmatpush1.msra.mxu0 0.0
    %1186 = vmatprep.subr.mxu0 0.0
    %1187 = vmatpush1.msra.mxu0 0.0
    %1188 = vmatprep.subr.mxu0 0.0
    %1189 = vmatpush1.msra.mxu0 0.0
    %1190 = vmatprep.subr.mxu0 0.0
    %1191 = vmatpush1.msra.mxu0 0.0
    %1192 = vmatprep.subr.mxu0 0.0
    %1193 = vmatpush1.msra.mxu0 0.0
    %1194 = vmatprep.subr.mxu0 0.0
    %1195 = vmatpush1.msra.mxu0 0.0
    %1196 = vmatprep.subr.mxu0 0.0
    %1197 = vmatpush1.msra.mxu0 0.0
    %1198 = vmatprep.subr.mxu0 0.0
    %1199 = vmatpush1.msra.mxu0 0.0
    %1200 = vmatprep.subr.mxu0 0.0
    %1201 = vmatpush1.msra.mxu0 0.0
    %1202 = vmatprep.subr.mxu0 0.0
    %1203 = vmatpush1.msra.mxu0 0.0
    %1204 = vmatprep.subr.mxu0 0.0
    %1205 = vmatpush1.msra.mxu0 0.0
    %1206 = vmatprep.subr.mxu0 0.0
    %1207 = vmatpush1.msra.mxu0 0.0
    %1208 = vmatprep.subr.mxu0 0.0
    %1209 = vmatpush1.msra.mxu0 0.0
    %1210 = vmatprep.subr.mxu0 0.0
    %1211 = vmatpush1.msra.mxu0 0.0
    %1212 = vmatprep.mubr.f32.mxu0 0.0
    %1213 = vmatmul.mubr.f32.gmra.mrb[0].mxu0 %v1143
    %v1214 = vpop.f32.mrb[0].mxu0
    %v1215 = vadd.f32 0.0, %v1214
    %v1216 = vpop.f32.mrb[0].mxu0
    %1217 = vmatprep.mubr.f32.mxu0 0.0
    %1218 = vmatmul.mubr.f32.gmra.mrb[0].mxu0 %v1146
    %v1219 = vpop.f32.mrb[0].mxu0
    %v1220 = vadd.f32 0.0, %v1219
    %v1221 = vpop.f32.mrb[0].mxu0
    %1222 = vdwg.mxu0
    %1223 = vset.pattern.permute.xlu0 2
    %1224 = vperm.xlu0 %1223, %v885
    %v1225 = vpop.permute.xlu0 %1224
    %1227 = vset.pattern.permute.xlu0 2
    %1228 = vperm.xlu0 %1227, %v891
    %v1229 = vpop.permute.xlu0 %1228
    %v1231 = vlaneseq
    %v1232 = vshrl.u32 %v1231, 7
    %v1233 = vsub.s32 2, %v1232
    %v1234 = vrot.slane %v960, %v1233
    %v1235 = vadd.f32 %v1225, %v1234
    %v1236 = vadd.f32 %v1229, %v1234
    %vm1237 = vcmp.gt.f32.partialorder %v1235, 0.0
    %vm1238 = vcmp.gt.f32.partialorder %v1236, 0.0
    %v1239 = vmul.f32 %v1235, 0.2
    %v1240 = vmul.f32 %v1236, 0.2
    %v1241 = vsel %vm1237, %v1235, %v1239
    %v1242 = vsel %vm1238, %v1236, %v1240
    %v1243 = vadd.f32 %v1241, %v42
    %v1244 = vadd.f32 %v1242, %v43
    %v1245 = vsel %vm52, %v1243, -inf
    %1246 = vmax.xlane.f32.xlu0 %v1245
    %v1247 = vpop.xlane.xlu0 %1246
    %v1248 = vsel %vm52, %v1244, -inf
    %1249 = vmax.xlane.f32.xlu0 %v1248
    %v1250 = vpop.xlane.xlu0 %1249
    %v1251 = vsub.f32 %v1243, %v1247
    %v1252 = vsub.f32 %v1244, %v1250
    %v1253 = vmul.f32 %v1251, 1.442695
    %v1254 = vpow.pop %v1253
    %v1255 = vmul.f32 %v1252, 1.442695
    %v1256 = vpow.pop %v1255
    %v1257 = vsel %vm52, %v1254, 0.0
    %1258 = vadd.xlane.f32.xlu0 %v1257
    %v1259 = vpop.xlane.xlu0 %1258
    %v1260 = vsel %vm52, %v1256, 0.0
    %1261 = vadd.xlane.f32.xlu0 %v1260
    %v1262 = vpop.xlane.xlu0 %1261
    %v1263 = vrcp.pop %v1259
    %v1264 = vmul.f32 %v1254, %v1263
    %v1265 = vrcp.pop %v1262
    %v1266 = vmul.f32 %v1256, %v1265
    %1267 = vrot.lane.b32.xlu0 %v883, 64
    %v1268 = vpop.permute.xlu0 %1267
    %1269 = vrot.lane.b32.xlu0 %v889, 64
    %v1270 = vpop.permute.xlu0 %1269
    %v1274 = vsel %vm52, %v1264, 0
    %v1277 = vsel %vm52, %v1266, 0
    %1279 = vmatprep.subr.mxu0 0.0
    %1280 = vmatpush1.msra.mxu0 %v1268
    %1281 = vmatprep.subr.mxu0 0.0
    %1282 = vmatpush1.msra.mxu0 %v1270
    %1283 = vmatprep.subr.mxu0 0.0
    %1284 = vmatpush1.msra.mxu0 0.0
    %1285 = vmatprep.subr.mxu0 0.0
    %1286 = vmatpush1.msra.mxu0 0.0
    %1287 = vmatprep.subr.mxu0 0.0
    %1288 = vmatpush1.msra.mxu0 0.0
    %1289 = vmatprep.subr.mxu0 0.0
    %1290 = vmatpush1.msra.mxu0 0.0
    %1291 = vmatprep.subr.mxu0 0.0
    %1292 = vmatpush1.msra.mxu0 0.0
    %1293 = vmatprep.subr.mxu0 0.0
    %1294 = vmatpush1.msra.mxu0 0.0
    %1295 = vmatprep.subr.mxu0 0.0
    %1296 = vmatpush1.msra.mxu0 0.0
    %1297 = vmatprep.subr.mxu0 0.0
    %1298 = vmatpush1.msra.mxu0 0.0
    %1299 = vmatprep.subr.mxu0 0.0
    %1300 = vmatpush1.msra.mxu0 0.0
    %1301 = vmatprep.subr.mxu0 0.0
    %1302 = vmatpush1.msra.mxu0 0.0
    %1303 = vmatprep.subr.mxu0 0.0
    %1304 = vmatpush1.msra.mxu0 0.0
    %1305 = vmatprep.subr.mxu0 0.0
    %1306 = vmatpush1.msra.mxu0 0.0
    %1307 = vmatprep.subr.mxu0 0.0
    %1308 = vmatpush1.msra.mxu0 0.0
    %1309 = vmatprep.subr.mxu0 0.0
    %1310 = vmatpush1.msra.mxu0 0.0
    %1311 = vmatprep.subr.mxu0 0.0
    %1312 = vmatpush1.msra.mxu0 0.0
    %1313 = vmatprep.subr.mxu0 0.0
    %1314 = vmatpush1.msra.mxu0 0.0
    %1315 = vmatprep.subr.mxu0 0.0
    %1316 = vmatpush1.msra.mxu0 0.0
    %1317 = vmatprep.subr.mxu0 0.0
    %1318 = vmatpush1.msra.mxu0 0.0
    %1319 = vmatprep.subr.mxu0 0.0
    %1320 = vmatpush1.msra.mxu0 0.0
    %1321 = vmatprep.subr.mxu0 0.0
    %1322 = vmatpush1.msra.mxu0 0.0
    %1323 = vmatprep.subr.mxu0 0.0
    %1324 = vmatpush1.msra.mxu0 0.0
    %1325 = vmatprep.subr.mxu0 0.0
    %1326 = vmatpush1.msra.mxu0 0.0
    %1327 = vmatprep.subr.mxu0 0.0
    %1328 = vmatpush1.msra.mxu0 0.0
    %1329 = vmatprep.subr.mxu0 0.0
    %1330 = vmatpush1.msra.mxu0 0.0
    %1331 = vmatprep.subr.mxu0 0.0
    %1332 = vmatpush1.msra.mxu0 0.0
    %1333 = vmatprep.subr.mxu0 0.0
    %1334 = vmatpush1.msra.mxu0 0.0
    %1335 = vmatprep.subr.mxu0 0.0
    %1336 = vmatpush1.msra.mxu0 0.0
    %1337 = vmatprep.subr.mxu0 0.0
    %1338 = vmatpush1.msra.mxu0 0.0
    %1339 = vmatprep.subr.mxu0 0.0
    %1340 = vmatpush1.msra.mxu0 0.0
    %1341 = vmatprep.subr.mxu0 0.0
    %1342 = vmatpush1.msra.mxu0 0.0
    %1343 = vmatprep.mubr.f32.mxu0 0.0
    %1344 = vmatmul.mubr.f32.gmra.mrb[0].mxu0 %v1274
    %v1345 = vpop.f32.mrb[0].mxu0
    %v1346 = vadd.f32 0.0, %v1345
    %v1347 = vpop.f32.mrb[0].mxu0
    %1348 = vmatprep.mubr.f32.mxu0 0.0
    %1349 = vmatmul.mubr.f32.gmra.mrb[0].mxu0 %v1277
    %v1350 = vpop.f32.mrb[0].mxu0
    %v1351 = vadd.f32 0.0, %v1350
    %v1352 = vpop.f32.mrb[0].mxu0
    %1353 = vdwg.mxu0
    %1354 = vset.pattern.permute.xlu0 3
    %1355 = vperm.xlu0 %1354, %v885
    %v1356 = vpop.permute.xlu0 %1355
    %1358 = vset.pattern.permute.xlu0 3
    %1359 = vperm.xlu0 %1358, %v891
    %v1360 = vpop.permute.xlu0 %1359
    %v1362 = vlaneseq
    %v1363 = vshrl.u32 %v1362, 7
    %v1364 = vsub.s32 3, %v1363
    %v1365 = vrot.slane %v960, %v1364
    %v1366 = vadd.f32 %v1356, %v1365
    %v1367 = vadd.f32 %v1360, %v1365
    %vm1368 = vcmp.gt.f32.partialorder %v1366, 0.0
    %vm1369 = vcmp.gt.f32.partialorder %v1367, 0.0
    %v1370 = vmul.f32 %v1366, 0.2
    %v1371 = vmul.f32 %v1367, 0.2
    %v1372 = vsel %vm1368, %v1366, %v1370
    %v1373 = vsel %vm1369, %v1367, %v1371
    %v1374 = vadd.f32 %v1372, %v42
    %v1375 = vadd.f32 %v1373, %v43
    %v1376 = vsel %vm52, %v1374, -inf
    %1377 = vmax.xlane.f32.xlu0 %v1376
    %v1378 = vpop.xlane.xlu0 %1377
    %v1379 = vsel %vm52, %v1375, -inf
    %1380 = vmax.xlane.f32.xlu0 %v1379
    %v1381 = vpop.xlane.xlu0 %1380
    %v1382 = vsub.f32 %v1374, %v1378
    %v1383 = vsub.f32 %v1375, %v1381
    %v1384 = vmul.f32 %v1382, 1.442695
    %v1385 = vpow.pop %v1384
    %v1386 = vmul.f32 %v1383, 1.442695
    %v1387 = vpow.pop %v1386
    %v1388 = vsel %vm52, %v1385, 0.0
    %1389 = vadd.xlane.f32.xlu0 %v1388
    %v1390 = vpop.xlane.xlu0 %1389
    %v1391 = vsel %vm52, %v1387, 0.0
    %1392 = vadd.xlane.f32.xlu0 %v1391
    %v1393 = vpop.xlane.xlu0 %1392
    %v1394 = vrcp.pop %v1390
    %v1395 = vmul.f32 %v1385, %v1394
    %v1396 = vrcp.pop %v1393
    %v1397 = vmul.f32 %v1387, %v1396
    %1398 = vrot.lane.b32.xlu0 %v883, 32
    %v1399 = vpop.permute.xlu0 %1398
    %1400 = vrot.lane.b32.xlu0 %v889, 32
    %v1401 = vpop.permute.xlu0 %1400
    %v1405 = vsel %vm52, %v1395, 0
    %v1408 = vsel %vm52, %v1397, 0
    %1410 = vmatprep.subr.mxu0 0.0
    %1411 = vmatpush1.msra.mxu0 %v1399
    %1412 = vmatprep.subr.mxu0 0.0
    %1413 = vmatpush1.msra.mxu0 %v1401
    %1414 = vmatprep.subr.mxu0 0.0
    %1415 = vmatpush1.msra.mxu0 0.0
    %1416 = vmatprep.subr.mxu0 0.0
    %1417 = vmatpush1.msra.mxu0 0.0
    %1418 = vmatprep.subr.mxu0 0.0
    %1419 = vmatpush1.msra.mxu0 0.0
    %1420 = vmatprep.subr.mxu0 0.0
    %1421 = vmatpush1.msra.mxu0 0.0
    %1422 = vmatprep.subr.mxu0 0.0
    %1423 = vmatpush1.msra.mxu0 0.0
    %1424 = vmatprep.subr.mxu0 0.0
    %1425 = vmatpush1.msra.mxu0 0.0
    %1426 = vmatprep.subr.mxu0 0.0
    %1427 = vmatpush1.msra.mxu0 0.0
    %1428 = vmatprep.subr.mxu0 0.0
    %1429 = vmatpush1.msra.mxu0 0.0
    %1430 = vmatprep.subr.mxu0 0.0
    %1431 = vmatpush1.msra.mxu0 0.0
    %1432 = vmatprep.subr.mxu0 0.0
    %1433 = vmatpush1.msra.mxu0 0.0
    %1434 = vmatprep.subr.mxu0 0.0
    %1435 = vmatpush1.msra.mxu0 0.0
    %1436 = vmatprep.subr.mxu0 0.0
    %1437 = vmatpush1.msra.mxu0 0.0
    %1438 = vmatprep.subr.mxu0 0.0
    %1439 = vmatpush1.msra.mxu0 0.0
    %1440 = vmatprep.subr.mxu0 0.0
    %1441 = vmatpush1.msra.mxu0 0.0
    %1442 = vmatprep.subr.mxu0 0.0
    %1443 = vmatpush1.msra.mxu0 0.0
    %1444 = vmatprep.subr.mxu0 0.0
    %1445 = vmatpush1.msra.mxu0 0.0
    %1446 = vmatprep.subr.mxu0 0.0
    %1447 = vmatpush1.msra.mxu0 0.0
    %1448 = vmatprep.subr.mxu0 0.0
    %1449 = vmatpush1.msra.mxu0 0.0
    %1450 = vmatprep.subr.mxu0 0.0
    %1451 = vmatpush1.msra.mxu0 0.0
    %1452 = vmatprep.subr.mxu0 0.0
    %1453 = vmatpush1.msra.mxu0 0.0
    %1454 = vmatprep.subr.mxu0 0.0
    %1455 = vmatpush1.msra.mxu0 0.0
    %1456 = vmatprep.subr.mxu0 0.0
    %1457 = vmatpush1.msra.mxu0 0.0
    %1458 = vmatprep.subr.mxu0 0.0
    %1459 = vmatpush1.msra.mxu0 0.0
    %1460 = vmatprep.subr.mxu0 0.0
    %1461 = vmatpush1.msra.mxu0 0.0
    %1462 = vmatprep.subr.mxu0 0.0
    %1463 = vmatpush1.msra.mxu0 0.0
    %1464 = vmatprep.subr.mxu0 0.0
    %1465 = vmatpush1.msra.mxu0 0.0
    %1466 = vmatprep.subr.mxu0 0.0
    %1467 = vmatpush1.msra.mxu0 0.0
    %1468 = vmatprep.subr.mxu0 0.0
    %1469 = vmatpush1.msra.mxu0 0.0
    %1470 = vmatprep.subr.mxu0 0.0
    %1471 = vmatpush1.msra.mxu0 0.0
    %1472 = vmatprep.subr.mxu0 0.0
    %1473 = vmatpush1.msra.mxu0 0.0
    %1474 = vmatprep.mubr.f32.mxu0 0.0
    %1475 = vmatmul.mubr.f32.gmra.mrb[0].mxu0 %v1405
    %v1476 = vpop.f32.mrb[0].mxu0
    %v1477 = vadd.f32 0.0, %v1476
    %v1478 = vpop.f32.mrb[0].mxu0
    %1479 = vmatprep.mubr.f32.mxu0 0.0
    %1480 = vmatmul.mubr.f32.gmra.mrb[0].mxu0 %v1408
    %v1481 = vpop.f32.mrb[0].mxu0
    %v1482 = vadd.f32 0.0, %v1481
    %v1483 = vpop.f32.mrb[0].mxu0
    %1484 = vdwg.mxu0
    %1487 = vrot.lane.b32.xlu0 %v1215, 32
    %v1488 = vpop.permute.xlu0 %1487
    %1489 = vrot.lane.b32.xlu0 %v1220, 32
    %v1490 = vpop.permute.xlu0 %1489
    %1495 = vrot.lane.b32.xlu0 %v1346, 64
    %v1496 = vpop.permute.xlu0 %1495
    %1497 = vrot.lane.b32.xlu0 %v1351, 64
    %v1498 = vpop.permute.xlu0 %1497
    %1503 = vrot.lane.b32.xlu0 %v1477, 96
    %v1504 = vpop.permute.xlu0 %1503
    %1505 = vrot.lane.b32.xlu0 %v1482, 96
    %v1506 = vpop.permute.xlu0 %1505
    %v1509 = vsel %vm755, %v1082, %v1488
    %v1510 = vsel %vm755, %v1087, %v1490
    %v1511 = vsel %vm758, %v1509, %v1496
    %v1512 = vsel %vm758, %v1510, %v1498
    %v1513 = vsel %vm761, %v1511, %v1504
    %v1514 = vsel %vm761, %v1512, %v1506
    %v1515 = vadd.f32 %v1513, %v780
    %v1516 = vadd.f32 %v1514, %v781
    %v1518 = vlaneseq
    %v1519 = vshrl.u32 %v1518, 7
    %v1520 = vsub.s32 0, %v1519
    %v1521 = vrot.slane %v815, %v1520
    %v1523 = vadd.f32 %v1515, %v1521
    %v1524 = vadd.f32 %v1516, %v1521
    %vm1525 = vcmp.gt.f32.partialorder %v1523, 0.0
    %vm1526 = vcmp.gt.f32.partialorder %v1524, 0.0
    %v1527 = vmul.f32 %v1523, 1.442695
    %v1528 = vpow.pop %v1527
    %v1529 = vmul.f32 %v1524, 1.442695
    %v1530 = vpow.pop %v1529
    %v1531 = vsub.f32 %v1528, 1.0
    %v1532 = vsub.f32 %v1530, 1.0
    %v1533 = vsel %vm1525, %v1523, %v1531
    %v1534 = vsel %vm1526, %v1524, %v1532
    %v1535 = vld [vmem:[%s8] sm:$0xff]
    %v1536 = vld [vmem:[%s8 + $0x8] sm:$0xff]
    %v1537 = vld [vmem:[%s8 + $0x10] sm:$0xff]
    %v1538 = vld [vmem:[%s8 + $0x18] sm:$0xff]
    %v1539 = vld [vmem:[%s8 + $0x20] sm:$0xff]
    %v1540 = vld [vmem:[%s8 + $0x28] sm:$0xff]
    %v1541 = vld [vmem:[%s8 + $0x30] sm:$0xff]
    %v1542 = vld [vmem:[%s8 + $0x38] sm:$0xff]
    %v1543 = vld [vmem:[%s8 + $0x40] sm:$0xff]
    %v1544 = vld [vmem:[%s8 + $0x48] sm:$0xff]
    %v1545 = vld [vmem:[%s8 + $0x50] sm:$0xff]
    %v1546 = vld [vmem:[%s8 + $0x58] sm:$0xff]
    %v1547 = vld [vmem:[%s8 + $0x60] sm:$0xff]
    %v1548 = vld [vmem:[%s8 + $0x68] sm:$0xff]
    %v1549 = vld [vmem:[%s8 + $0x70] sm:$0xff]
    %v1550 = vld [vmem:[%s8 + $0x78] sm:$0xff]
    %v1551 = vld [vmem:[%s9] sm:$0x3]
    %v1552 = vld [vmem:[%s11] sm:$0x1]
    %v1553 = vld [vmem:[%s10] sm:$0xff]
    %v1554 = vld [vmem:[%s10 + $0x8] sm:$0xff]
    %v1555 = vld [vmem:[%s10 + $0x10] sm:$0xff]
    %v1556 = vld [vmem:[%s10 + $0x18] sm:$0xff]
    %v1557 = vld [vmem:[%s10 + $0x20] sm:$0xff]
    %v1558 = vld [vmem:[%s10 + $0x28] sm:$0xff]
    %v1559 = vld [vmem:[%s10 + $0x30] sm:$0xff]
    %v1560 = vld [vmem:[%s10 + $0x38] sm:$0xff]
    %v1561 = vld [vmem:[%s10 + $0x40] sm:$0xff]
    %v1562 = vld [vmem:[%s10 + $0x48] sm:$0xff]
    %v1563 = vld [vmem:[%s10 + $0x50] sm:$0xff]
    %v1564 = vld [vmem:[%s10 + $0x58] sm:$0xff]
    %v1565 = vld [vmem:[%s10 + $0x60] sm:$0xff]
    %v1566 = vld [vmem:[%s10 + $0x68] sm:$0xff]
    %v1567 = vld [vmem:[%s10 + $0x70] sm:$0xff]
    %v1568 = vld [vmem:[%s10 + $0x78] sm:$0xff]
    %1569 = vmatprep.subr.mxu0 0.0
    %1570 = vmatpush1.msra.mxu0 %v1535
    %1571 = vmatprep.subr.mxu0 0.0
    %1572 = vmatpush1.msra.mxu0 %v1536
    %1573 = vmatprep.subr.mxu0 0.0
    %1574 = vmatpush1.msra.mxu0 %v1537
    %1575 = vmatprep.subr.mxu0 0.0
    %1576 = vmatpush1.msra.mxu0 %v1538
    %1577 = vmatprep.subr.mxu0 0.0
    %1578 = vmatpush1.msra.mxu0 %v1539
    %1579 = vmatprep.subr.mxu0 0.0
    %1580 = vmatpush1.msra.mxu0 %v1540
    %1581 = vmatprep.subr.mxu0 0.0
    %1582 = vmatpush1.msra.mxu0 %v1541
    %1583 = vmatprep.subr.mxu0 0.0
    %1584 = vmatpush1.msra.mxu0 %v1542
    %1585 = vmatprep.subr.mxu0 0.0
    %1586 = vmatpush1.msra.mxu0 %v1543
    %1587 = vmatprep.subr.mxu0 0.0
    %1588 = vmatpush1.msra.mxu0 %v1544
    %1589 = vmatprep.subr.mxu0 0.0
    %1590 = vmatpush1.msra.mxu0 %v1545
    %1591 = vmatprep.subr.mxu0 0.0
    %1592 = vmatpush1.msra.mxu0 %v1546
    %1593 = vmatprep.subr.mxu0 0.0
    %1594 = vmatpush1.msra.mxu0 %v1547
    %1595 = vmatprep.subr.mxu0 0.0
    %1596 = vmatpush1.msra.mxu0 %v1548
    %1597 = vmatprep.subr.mxu0 0.0
    %1598 = vmatpush1.msra.mxu0 %v1549
    %1599 = vmatprep.subr.mxu0 0.0
    %1600 = vmatpush1.msra.mxu0 %v1550
    %1601 = vmatprep.subr.mxu0 0.0
    %1602 = vmatpush1.msra.mxu0 0.0
    %1603 = vmatprep.subr.mxu0 0.0
    %1604 = vmatpush1.msra.mxu0 0.0
    %1605 = vmatprep.subr.mxu0 0.0
    %1606 = vmatpush1.msra.mxu0 0.0
    %1607 = vmatprep.subr.mxu0 0.0
    %1608 = vmatpush1.msra.mxu0 0.0
    %1609 = vmatprep.subr.mxu0 0.0
    %1610 = vmatpush1.msra.mxu0 0.0
    %1611 = vmatprep.subr.mxu0 0.0
    %1612 = vmatpush1.msra.mxu0 0.0
    %1613 = vmatprep.subr.mxu0 0.0
    %1614 = vmatpush1.msra.mxu0 0.0
    %1615 = vmatprep.subr.mxu0 0.0
    %1616 = vmatpush1.msra.mxu0 0.0
    %1617 = vmatprep.subr.mxu0 0.0
    %1618 = vmatpush1.msra.mxu0 0.0
    %1619 = vmatprep.subr.mxu0 0.0
    %1620 = vmatpush1.msra.mxu0 0.0
    %1621 = vmatprep.subr.mxu0 0.0
    %1622 = vmatpush1.msra.mxu0 0.0
    %1623 = vmatprep.subr.mxu0 0.0
    %1624 = vmatpush1.msra.mxu0 0.0
    %1625 = vmatprep.subr.mxu0 0.0
    %1626 = vmatpush1.msra.mxu0 0.0
    %1627 = vmatprep.subr.mxu0 0.0
    %1628 = vmatpush1.msra.mxu0 0.0
    %1629 = vmatprep.subr.mxu0 0.0
    %1630 = vmatpush1.msra.mxu0 0.0
    %1631 = vmatprep.subr.mxu0 0.0
    %1632 = vmatpush1.msra.mxu0 0.0
    %1633 = vmatprep.mubr.f32.mxu0 0.0
    %1634 = vmatmul.mubr.f32.gmra.mrb[0].mxu0 %v1533
    %v1635 = vpop.f32.mrb[0].mxu0
    %v1636 = vadd.f32 0.0, %v1635
    %v1637 = vpop.f32.mrb[0].mxu0
    %1638 = vmatprep.mubr.f32.mxu0 0.0
    %1639 = vmatmul.mubr.f32.gmra.mrb[0].mxu0 %v1534
    %v1640 = vpop.f32.mrb[0].mxu0
    %v1641 = vadd.f32 0.0, %v1640
    %v1642 = vpop.f32.mrb[0].mxu0
    %1643 = vdwg.mxu0
    %1644 = vmatprep.subr.mxu0 0.0
    %1645 = vmatpush1.xpose.msra.mxu0 %v1533
    %1646 = vmatprep.subr.mxu0 0.0
    %1647 = vmatpush1.xpose.msra.mxu0 %v1534
    %1648 = vmatprep.subr.mxu0 0.0
    %1649 = vmatpush1.xpose.msra.mxu0 0.0
    %1650 = vmatprep.subr.mxu0 0.0
    %1651 = vmatpush1.xpose.msra.mxu0 0.0
    %1652 = vmatprep.subr.mxu0 0.0
    %1653 = vmatpush1.xpose.msra.mxu0 0.0
    %1654 = vmatprep.subr.mxu0 0.0
    %1655 = vmatpush1.xpose.msra.mxu0 0.0
    %1656 = vmatprep.subr.mxu0 0.0
    %1657 = vmatpush1.xpose.msra.mxu0 0.0
    %1658 = vmatprep.subr.mxu0 0.0
    %1659 = vmatpush1.xpose.msra.mxu0 0.0
    %1660 = vmatprep.subr.mxu0 0.0
    %1661 = vmatpush1.xpose.msra.mxu0 0.0
    %1662 = vmatprep.subr.mxu0 0.0
    %1663 = vmatpush1.xpose.msra.mxu0 0.0
    %1664 = vmatprep.subr.mxu0 0.0
    %1665 = vmatpush1.xpose.msra.mxu0 0.0
    %1666 = vmatprep.subr.mxu0 0.0
    %1667 = vmatpush1.xpose.msra.mxu0 0.0
    %1668 = vmatprep.subr.mxu0 0.0
    %1669 = vmatpush1.xpose.msra.mxu0 0.0
    %1670 = vmatprep.subr.mxu0 0.0
    %1671 = vmatpush1.xpose.msra.mxu0 0.0
    %1672 = vmatprep.subr.mxu0 0.0
    %1673 = vmatpush1.xpose.msra.mxu0 0.0
    %1674 = vmatprep.subr.mxu0 0.0
    %1675 = vmatpush1.xpose.msra.mxu0 0.0
    %1676 = vmatprep.subr.mxu0 0.0
    %1677 = vmatpush1.xpose.msra.mxu0 0.0
    %1678 = vmatprep.subr.mxu0 0.0
    %1679 = vmatpush1.xpose.msra.mxu0 0.0
    %1680 = vmatprep.subr.mxu0 0.0
    %1681 = vmatpush1.xpose.msra.mxu0 0.0
    %1682 = vmatprep.subr.mxu0 0.0
    %1683 = vmatpush1.xpose.msra.mxu0 0.0
    %1684 = vmatprep.subr.mxu0 0.0
    %1685 = vmatpush1.xpose.msra.mxu0 0.0
    %1686 = vmatprep.subr.mxu0 0.0
    %1687 = vmatpush1.xpose.msra.mxu0 0.0
    %1688 = vmatprep.subr.mxu0 0.0
    %1689 = vmatpush1.xpose.msra.mxu0 0.0
    %1690 = vmatprep.subr.mxu0 0.0
    %1691 = vmatpush1.xpose.msra.mxu0 0.0
    %1692 = vmatprep.subr.mxu0 0.0
    %1693 = vmatpush1.xpose.msra.mxu0 0.0
    %1694 = vmatprep.subr.mxu0 0.0
    %1695 = vmatpush1.xpose.msra.mxu0 0.0
    %1696 = vmatprep.subr.mxu0 0.0
    %1697 = vmatpush1.xpose.msra.mxu0 0.0
    %1698 = vmatprep.subr.mxu0 0.0
    %1699 = vmatpush1.xpose.msra.mxu0 0.0
    %1700 = vmatprep.subr.mxu0 0.0
    %1701 = vmatpush1.xpose.msra.mxu0 0.0
    %1702 = vmatprep.subr.mxu0 0.0
    %1703 = vmatpush1.xpose.msra.mxu0 0.0
    %1704 = vmatprep.subr.mxu0 0.0
    %1705 = vmatpush1.xpose.msra.mxu0 0.0
    %1706 = vmatprep.subr.mxu0 0.0
    %1707 = vmatpush1.xpose.msra.mxu0 0.0
    %1708 = vmatprep.mubr.f32.mxu0 0.0
    %1709 = vmatmul.mubr.f32.gmra.mrb[0].mxu0 %v1551
    %v1710 = vpop.f32.mrb[0].mxu0
    %v1711 = vadd.f32 0.0, %v1710
    %v1712 = vpop.f32.mrb[0].mxu0
    %1713 = vdwg.mxu0
    %1715 = vset.pattern.permute.xlu0 64
    %1716 = vperm.xlu0 %1715, %v1636
    %v1717 = vpop.permute.xlu0 %1716
    %1720 = vset.pattern.permute.xlu0 64
    %1721 = vperm.xlu0 %1720, %v1641
    %v1722 = vpop.permute.xlu0 %1721
    %v1724 = vlaneseq
    %v1725 = vshrl.u32 %v1724, 7
    %v1726 = vsub.s32 0, %v1725
    %v1727 = vrot.slane %v1711, %v1726
    %v1728 = vadd.f32 %v1717, %v1727
    %v1729 = vadd.f32 %v1722, %v1727
    %vm1730 = vcmp.gt.f32.partialorder %v1728, 0.0
    %vm1731 = vcmp.gt.f32.partialorder %v1729, 0.0
    %v1732 = vmul.f32 %v1728, 0.2
    %v1733 = vmul.f32 %v1729, 0.2
    %v1734 = vsel %vm1730, %v1728, %v1732
    %v1735 = vsel %vm1731, %v1729, %v1733
    %v1736 = vadd.f32 %v1734, %v42
    %v1737 = vadd.f32 %v1735, %v43
    %v1738 = vsel %vm52, %v1736, -inf
    %1739 = vmax.xlane.f32.xlu0 %v1738
    %v1740 = vpop.xlane.xlu0 %1739
    %v1741 = vsel %vm52, %v1737, -inf
    %1742 = vmax.xlane.f32.xlu0 %v1741
    %v1743 = vpop.xlane.xlu0 %1742
    %v1744 = vsub.f32 %v1736, %v1740
    %v1745 = vsub.f32 %v1737, %v1743
    %v1746 = vmul.f32 %v1744, 1.442695
    %v1747 = vpow.pop %v1746
    %v1748 = vmul.f32 %v1745, 1.442695
    %v1749 = vpow.pop %v1748
    %v1750 = vsel %vm52, %v1747, 0.0
    %1751 = vadd.xlane.f32.xlu0 %v1750
    %v1752 = vpop.xlane.xlu0 %1751
    %v1753 = vsel %vm52, %v1749, 0.0
    %1754 = vadd.xlane.f32.xlu0 %v1753
    %v1755 = vpop.xlane.xlu0 %1754
    %v1756 = vrcp.pop %v1752
    %v1757 = vmul.f32 %v1747, %v1756
    %v1758 = vrcp.pop %v1755
    %v1759 = vmul.f32 %v1749, %v1758
    %v1761 = vsel %vm52, %v1757, 0
    %v1764 = vsel %vm52, %v1759, 0
    %1766 = vmatprep.subr.mxu0 0.0
    %1767 = vmatpush1.msra.mxu0 %v1636
    %1768 = vmatprep.subr.mxu0 0.0
    %1769 = vmatpush1.msra.mxu0 %v1641
    %1770 = vmatprep.subr.mxu0 0.0
    %1771 = vmatpush1.msra.mxu0 0.0
    %1772 = vmatprep.subr.mxu0 0.0
    %1773 = vmatpush1.msra.mxu0 0.0
    %1774 = vmatprep.subr.mxu0 0.0
    %1775 = vmatpush1.msra.mxu0 0.0
    %1776 = vmatprep.subr.mxu0 0.0
    %1777 = vmatpush1.msra.mxu0 0.0
    %1778 = vmatprep.subr.mxu0 0.0
    %1779 = vmatpush1.msra.mxu0 0.0
    %1780 = vmatprep.subr.mxu0 0.0
    %1781 = vmatpush1.msra.mxu0 0.0
    %1782 = vmatprep.subr.mxu0 0.0
    %1783 = vmatpush1.msra.mxu0 0.0
    %1784 = vmatprep.subr.mxu0 0.0
    %1785 = vmatpush1.msra.mxu0 0.0
    %1786 = vmatprep.subr.mxu0 0.0
    %1787 = vmatpush1.msra.mxu0 0.0
    %1788 = vmatprep.subr.mxu0 0.0
    %1789 = vmatpush1.msra.mxu0 0.0
    %1790 = vmatprep.subr.mxu0 0.0
    %1791 = vmatpush1.msra.mxu0 0.0
    %1792 = vmatprep.subr.mxu0 0.0
    %1793 = vmatpush1.msra.mxu0 0.0
    %1794 = vmatprep.subr.mxu0 0.0
    %1795 = vmatpush1.msra.mxu0 0.0
    %1796 = vmatprep.subr.mxu0 0.0
    %1797 = vmatpush1.msra.mxu0 0.0
    %1798 = vmatprep.subr.mxu0 0.0
    %1799 = vmatpush1.msra.mxu0 0.0
    %1800 = vmatprep.subr.mxu0 0.0
    %1801 = vmatpush1.msra.mxu0 0.0
    %1802 = vmatprep.subr.mxu0 0.0
    %1803 = vmatpush1.msra.mxu0 0.0
    %1804 = vmatprep.subr.mxu0 0.0
    %1805 = vmatpush1.msra.mxu0 0.0
    %1806 = vmatprep.subr.mxu0 0.0
    %1807 = vmatpush1.msra.mxu0 0.0
    %1808 = vmatprep.subr.mxu0 0.0
    %1809 = vmatpush1.msra.mxu0 0.0
    %1810 = vmatprep.subr.mxu0 0.0
    %1811 = vmatpush1.msra.mxu0 0.0
    %1812 = vmatprep.subr.mxu0 0.0
    %1813 = vmatpush1.msra.mxu0 0.0
    %1814 = vmatprep.subr.mxu0 0.0
    %1815 = vmatpush1.msra.mxu0 0.0
    %1816 = vmatprep.subr.mxu0 0.0
    %1817 = vmatpush1.msra.mxu0 0.0
    %1818 = vmatprep.subr.mxu0 0.0
    %1819 = vmatpush1.msra.mxu0 0.0
    %1820 = vmatprep.subr.mxu0 0.0
    %1821 = vmatpush1.msra.mxu0 0.0
    %1822 = vmatprep.subr.mxu0 0.0
    %1823 = vmatpush1.msra.mxu0 0.0
    %1824 = vmatprep.subr.mxu0 0.0
    %1825 = vmatpush1.msra.mxu0 0.0
    %1826 = vmatprep.subr.mxu0 0.0
    %1827 = vmatpush1.msra.mxu0 0.0
    %1828 = vmatprep.subr.mxu0 0.0
    %1829 = vmatpush1.msra.mxu0 0.0
    %1830 = vmatprep.mubr.f32.mxu0 0.0
    %1831 = vmatmul.mubr.f32.gmra.mrb[0].mxu0 %v1761
    %v1832 = vpop.f32.mrb[0].mxu0
    %v1833 = vadd.f32 0.0, %v1832
    %v1834 = vpop.f32.mrb[0].mxu0
    %1835 = vmatprep.mubr.f32.mxu0 0.0
    %1836 = vmatmul.mubr.f32.gmra.mrb[0].mxu0 %v1764
    %v1837 = vpop.f32.mrb[0].mxu0
    %v1838 = vadd.f32 0.0, %v1837
    %v1839 = vpop.f32.mrb[0].mxu0
    %1840 = vdwg.mxu0
    %1841 = vset.pattern.permute.xlu0 65
    %1842 = vperm.xlu0 %1841, %v1636
    %v1843 = vpop.permute.xlu0 %1842
    %1845 = vset.pattern.permute.xlu0 65
    %1846 = vperm.xlu0 %1845, %v1641
    %v1847 = vpop.permute.xlu0 %1846
    %v1849 = vlaneseq
    %v1850 = vshrl.u32 %v1849, 7
    %v1851 = vsub.s32 1, %v1850
    %v1852 = vrot.slane %v1711, %v1851
    %v1853 = vadd.f32 %v1843, %v1852
    %v1854 = vadd.f32 %v1847, %v1852
    %vm1855 = vcmp.gt.f32.partialorder %v1853, 0.0
    %vm1856 = vcmp.gt.f32.partialorder %v1854, 0.0
    %v1857 = vmul.f32 %v1853, 0.2
    %v1858 = vmul.f32 %v1854, 0.2
    %v1859 = vsel %vm1855, %v1853, %v1857
    %v1860 = vsel %vm1856, %v1854, %v1858
    %v1861 = vadd.f32 %v1859, %v42
    %v1862 = vadd.f32 %v1860, %v43
    %v1863 = vsel %vm52, %v1861, -inf
    %1864 = vmax.xlane.f32.xlu0 %v1863
    %v1865 = vpop.xlane.xlu0 %1864
    %v1866 = vsel %vm52, %v1862, -inf
    %1867 = vmax.xlane.f32.xlu0 %v1866
    %v1868 = vpop.xlane.xlu0 %1867
    %v1869 = vsub.f32 %v1861, %v1865
    %v1870 = vsub.f32 %v1862, %v1868
    %v1871 = vmul.f32 %v1869, 1.442695
    %v1872 = vpow.pop %v1871
    %v1873 = vmul.f32 %v1870, 1.442695
    %v1874 = vpow.pop %v1873
    %v1875 = vsel %vm52, %v1872, 0.0
    %1876 = vadd.xlane.f32.xlu0 %v1875
    %v1877 = vpop.xlane.xlu0 %1876
    %v1878 = vsel %vm52, %v1874, 0.0
    %1879 = vadd.xlane.f32.xlu0 %v1878
    %v1880 = vpop.xlane.xlu0 %1879
    %v1881 = vrcp.pop %v1877
    %v1882 = vmul.f32 %v1872, %v1881
    %v1883 = vrcp.pop %v1880
    %v1884 = vmul.f32 %v1874, %v1883
    %1885 = vrot.lane.b32.xlu0 %v1636, 96
    %v1886 = vpop.permute.xlu0 %1885
    %1887 = vrot.lane.b32.xlu0 %v1641, 96
    %v1888 = vpop.permute.xlu0 %1887
    %v1892 = vsel %vm52, %v1882, 0
    %v1895 = vsel %vm52, %v1884, 0
    %1897 = vmatprep.subr.mxu0 0.0
    %1898 = vmatpush1.msra.mxu0 %v1886
    %1899 = vmatprep.subr.mxu0 0.0
    %1900 = vmatpush1.msra.mxu0 %v1888
    %1901 = vmatprep.subr.mxu0 0.0
    %1902 = vmatpush1.msra.mxu0 0.0
    %1903 = vmatprep.subr.mxu0 0.0
    %1904 = vmatpush1.msra.mxu0 0.0
    %1905 = vmatprep.subr.mxu0 0.0
    %1906 = vmatpush1.msra.mxu0 0.0
    %1907 = vmatprep.subr.mxu0 0.0
    %1908 = vmatpush1.msra.mxu0 0.0
    %1909 = vmatprep.subr.mxu0 0.0
    %1910 = vmatpush1.msra.mxu0 0.0
    %1911 = vmatprep.subr.mxu0 0.0
    %1912 = vmatpush1.msra.mxu0 0.0
    %1913 = vmatprep.subr.mxu0 0.0
    %1914 = vmatpush1.msra.mxu0 0.0
    %1915 = vmatprep.subr.mxu0 0.0
    %1916 = vmatpush1.msra.mxu0 0.0
    %1917 = vmatprep.subr.mxu0 0.0
    %1918 = vmatpush1.msra.mxu0 0.0
    %1919 = vmatprep.subr.mxu0 0.0
    %1920 = vmatpush1.msra.mxu0 0.0
    %1921 = vmatprep.subr.mxu0 0.0
    %1922 = vmatpush1.msra.mxu0 0.0
    %1923 = vmatprep.subr.mxu0 0.0
    %1924 = vmatpush1.msra.mxu0 0.0
    %1925 = vmatprep.subr.mxu0 0.0
    %1926 = vmatpush1.msra.mxu0 0.0
    %1927 = vmatprep.subr.mxu0 0.0
    %1928 = vmatpush1.msra.mxu0 0.0
    %1929 = vmatprep.subr.mxu0 0.0
    %1930 = vmatpush1.msra.mxu0 0.0
    %1931 = vmatprep.subr.mxu0 0.0
    %1932 = vmatpush1.msra.mxu0 0.0
    %1933 = vmatprep.subr.mxu0 0.0
    %1934 = vmatpush1.msra.mxu0 0.0
    %1935 = vmatprep.subr.mxu0 0.0
    %1936 = vmatpush1.msra.mxu0 0.0
    %1937 = vmatprep.subr.mxu0 0.0
    %1938 = vmatpush1.msra.mxu0 0.0
    %1939 = vmatprep.subr.mxu0 0.0
    %1940 = vmatpush1.msra.mxu0 0.0
    %1941 = vmatprep.subr.mxu0 0.0
    %1942 = vmatpush1.msra.mxu0 0.0
    %1943 = vmatprep.subr.mxu0 0.0
    %1944 = vmatpush1.msra.mxu0 0.0
    %1945 = vmatprep.subr.mxu0 0.0
    %1946 = vmatpush1.msra.mxu0 0.0
    %1947 = vmatprep.subr.mxu0 0.0
    %1948 = vmatpush1.msra.mxu0 0.0
    %1949 = vmatprep.subr.mxu0 0.0
    %1950 = vmatpush1.msra.mxu0 0.0
    %1951 = vmatprep.subr.mxu0 0.0
    %1952 = vmatpush1.msra.mxu0 0.0
    %1953 = vmatprep.subr.mxu0 0.0
    %1954 = vmatpush1.msra.mxu0 0.0
    %1955 = vmatprep.subr.mxu0 0.0
    %1956 = vmatpush1.msra.mxu0 0.0
    %1957 = vmatprep.subr.mxu0 0.0
    %1958 = vmatpush1.msra.mxu0 0.0
    %1959 = vmatprep.subr.mxu0 0.0
    %1960 = vmatpush1.msra.mxu0 0.0
    %1961 = vmatprep.mubr.f32.mxu0 0.0
    %1962 = vmatmul.mubr.f32.gmra.mrb[0].mxu0 %v1892
    %v1963 = vpop.f32.mrb[0].mxu0
    %v1964 = vadd.f32 0.0, %v1963
    %v1965 = vpop.f32.mrb[0].mxu0
    %1966 = vmatprep.mubr.f32.mxu0 0.0
    %1967 = vmatmul.mubr.f32.gmra.mrb[0].mxu0 %v1895
    %v1968 = vpop.f32.mrb[0].mxu0
    %v1969 = vadd.f32 0.0, %v1968
    %v1970 = vpop.f32.mrb[0].mxu0
    %1971 = vdwg.mxu0
    %1974 = vrot.lane.b32.xlu0 %v1964, 32
    %v1975 = vpop.permute.xlu0 %1974
    %1976 = vrot.lane.b32.xlu0 %v1969, 32
    %v1977 = vpop.permute.xlu0 %1976
    %v1980 = vsel %vm755, %v1833, %v1975
    %v1981 = vsel %vm755, %v1838, %v1977
    %1982 = vmatprep.subr.mxu0 0.0
    %1983 = vmatpush1.msra.mxu0 %v1553
    %1984 = vmatprep.subr.mxu0 0.0
    %1985 = vmatpush1.msra.mxu0 %v1554
    %1986 = vmatprep.subr.mxu0 0.0
    %1987 = vmatpush1.msra.mxu0 %v1555
    %1988 = vmatprep.subr.mxu0 0.0
    %1989 = vmatpush1.msra.mxu0 %v1556
    %1990 = vmatprep.subr.mxu0 0.0
    %1991 = vmatpush1.msra.mxu0 %v1557
    %1992 = vmatprep.subr.mxu0 0.0
    %1993 = vmatpush1.msra.mxu0 %v1558
    %1994 = vmatprep.subr.mxu0 0.0
    %1995 = vmatpush1.msra.mxu0 %v1559
    %1996 = vmatprep.subr.mxu0 0.0
    %1997 = vmatpush1.msra.mxu0 %v1560
    %1998 = vmatprep.subr.mxu0 0.0
    %1999 = vmatpush1.msra.mxu0 %v1561
    %2000 = vmatprep.subr.mxu0 0.0
    %2001 = vmatpush1.msra.mxu0 %v1562
    %2002 = vmatprep.subr.mxu0 0.0
    %2003 = vmatpush1.msra.mxu0 %v1563
    %2004 = vmatprep.subr.mxu0 0.0
    %2005 = vmatpush1.msra.mxu0 %v1564
    %2006 = vmatprep.subr.mxu0 0.0
    %2007 = vmatpush1.msra.mxu0 %v1565
    %2008 = vmatprep.subr.mxu0 0.0
    %2009 = vmatpush1.msra.mxu0 %v1566
    %2010 = vmatprep.subr.mxu0 0.0
    %2011 = vmatpush1.msra.mxu0 %v1567
    %2012 = vmatprep.subr.mxu0 0.0
    %2013 = vmatpush1.msra.mxu0 %v1568
    %2014 = vmatprep.subr.mxu0 0.0
    %2015 = vmatpush1.msra.mxu0 0.0
    %2016 = vmatprep.subr.mxu0 0.0
    %2017 = vmatpush1.msra.mxu0 0.0
    %2018 = vmatprep.subr.mxu0 0.0
    %2019 = vmatpush1.msra.mxu0 0.0
    %2020 = vmatprep.subr.mxu0 0.0
    %2021 = vmatpush1.msra.mxu0 0.0
    %2022 = vmatprep.subr.mxu0 0.0
    %2023 = vmatpush1.msra.mxu0 0.0
    %2024 = vmatprep.subr.mxu0 0.0
    %2025 = vmatpush1.msra.mxu0 0.0
    %2026 = vmatprep.subr.mxu0 0.0
    %2027 = vmatpush1.msra.mxu0 0.0
    %2028 = vmatprep.subr.mxu0 0.0
    %2029 = vmatpush1.msra.mxu0 0.0
    %2030 = vmatprep.subr.mxu0 0.0
    %2031 = vmatpush1.msra.mxu0 0.0
    %2032 = vmatprep.subr.mxu0 0.0
    %2033 = vmatpush1.msra.mxu0 0.0
    %2034 = vmatprep.subr.mxu0 0.0
    %2035 = vmatpush1.msra.mxu0 0.0
    %2036 = vmatprep.subr.mxu0 0.0
    %2037 = vmatpush1.msra.mxu0 0.0
    %2038 = vmatprep.subr.mxu0 0.0
    %2039 = vmatpush1.msra.mxu0 0.0
    %2040 = vmatprep.subr.mxu0 0.0
    %2041 = vmatpush1.msra.mxu0 0.0
    %2042 = vmatprep.subr.mxu0 0.0
    %2043 = vmatpush1.msra.mxu0 0.0
    %2044 = vmatprep.subr.mxu0 0.0
    %2045 = vmatpush1.msra.mxu0 0.0
    %2046 = vmatprep.mubr.f32.mxu0 0.0
    %2047 = vmatmul.mubr.f32.gmra.mrb[0].mxu0 %v1533
    %v2048 = vpop.f32.mrb[0].mxu0
    %v2049 = vadd.f32 0.0, %v2048
    %v2050 = vpop.f32.mrb[0].mxu0
    %2051 = vmatprep.mubr.f32.mxu0 0.0
    %2052 = vmatmul.mubr.f32.gmra.mrb[0].mxu0 %v1534
    %v2053 = vpop.f32.mrb[0].mxu0
    %v2054 = vadd.f32 0.0, %v2053
    %v2055 = vpop.f32.mrb[0].mxu0
    %2056 = vdwg.mxu0
    %v2057 = vadd.f32 %v1980, %v2049
    %v2058 = vadd.f32 %v1981, %v2054
    %v2060 = vlaneseq
    %v2061 = vshrl.u32 %v2060, 7
    %v2062 = vsub.s32 0, %v2061
    %v2063 = vrot.slane %v1552, %v2062
    %v2065 = vadd.f32 %v2057, %v2063
    %v2066 = vadd.f32 %v2058, %v2063
    %vm2067 = vcmp.gt.f32.partialorder %v2065, 0.0
    %vm2068 = vcmp.gt.f32.partialorder %v2066, 0.0
    %v2069 = vmul.f32 %v2065, 1.442695
    %v2070 = vpow.pop %v2069
    %v2071 = vmul.f32 %v2066, 1.442695
    %v2072 = vpow.pop %v2071
    %v2073 = vsub.f32 %v2070, 1.0
    %v2074 = vsub.f32 %v2072, 1.0
    %v2075 = vsel %vm2067, %v2065, %v2073
    %v2076 = vsel %vm2068, %v2066, %v2074
    %2079 = vrot.lane.b32.xlu0 %v2075, 96
    %v2080 = vpop.permute.xlu0 %2079
    %2081 = vrot.lane.b32.xlu0 %v2076, 96
    %v2082 = vpop.permute.xlu0 %2081
    %v2085 = vadd.f32 %v2075, %v2080
    %v2086 = vadd.f32 %v2076, %v2082
    %v2087 = vmul.f32 %v2085, 0.5
    %v2088 = vmul.f32 %v2086, 0.5
    %2089 = vst.msk [vmem:[#allocation2] sm:$0xff] %vm755, %v2087
    %2090 = vst.msk [vmem:[#allocation2 + $0x8] sm:$0xff] %vm755, %v2088
    // Predicated region
    $region50: #{tpu_custom_call.1} parent=1 // pred_check
      _
    $region51: #{tpu_custom_call.1} parent=1 // pred_check_branch
      %2092 = sbr.rel (0) target = $region53
    $region52: #{tpu_custom_call.1} parent=1 // pred_region
      %s2094 = ssub.s32 256, 256
      %2095 = vsyncadd [#allocation3], %s2094
      %s2096 = sshll.u32 [#allocation2], 4
      %s2097 = int_to_ptr.vmem [resolvable:$true] %s2096
      %2102 = dma.vmem_to_hbm [thread:$0]  %s2097, 256, %s12, [#allocation3], 128, 128, 8
    $region53: #{tpu_custom_call.1} parent=1 // pred_fallthru
      _
    // Predicated region
    $region54: #{tpu_custom_call.1} parent=1 // pred_check
      _
    $region55: #{tpu_custom_call.1} parent=1 // pred_check_branch
      %2104 = sbr.rel (0) target = $region57
    $region56: #{tpu_custom_call.1} parent=1 // pred_region
      %2105 = dma.done [#allocation3], 256
    $region57: #{tpu_custom_call.1} parent=1 // pred_fallthru
      _
    %2106 = vsyncpa [#allocation3], 1

</llo_original>
